<compile_context>
chip_gen: v7x
topology: tpu7x:2x2x1
jax: 0.10.0
libtpu: 0.0.40
codegen_flags: <defaults>
</compile_context>

<pallas_src>
import math
import functools

import jax
import jax.numpy as jnp
from jax import lax
from jax.experimental import pallas as pl
from jax.experimental.pallas import tpu as pltpu

EPS = 1e-6
GELU_C = 0.7978845608028654  # sqrt(2/pi)
NEG_INF = -1e30


# ------------------------------ small utils ---------------------------------

def _pick_tile(n, cands=(512, 256, 128)):
    """Largest MXU-friendly tile that divides n, else the full extent."""
    for c in cands:
        if n % c == 0:
            return c
    return n


def _vmem_limit_bytes():
    # ~75% of physical VMEM, capped at 100 MiB (v5e/v6e: 128 MiB physical,
    # v7x: 64 MiB).  Conservative 48 MiB fallback if the query fails.
    try:
        cap = int(pltpu.get_tpu_info().vmem_capacity_bytes)
    except Exception:
        cap = 64 * 1024 * 1024
    return int(min(100 * 1024 * 1024, max(32 * 1024 * 1024, (cap * 3) // 4)))


def _const_spec(shape, index_map):
    """Constant-index (weight) BlockSpec, single-buffered when supported."""
    try:
        return pl.BlockSpec(shape, index_map, pipeline_mode=pl.Buffered(1))
    except Exception:
        return pl.BlockSpec(shape, index_map)


# ----------------------------- in-kernel helpers ----------------------------

def _layernorm(x):
    m = jnp.mean(x, axis=-1, keepdims=True)
    v = jnp.mean(jnp.square(x - m), axis=-1, keepdims=True)
    return (x - m) * lax.rsqrt(v + EPS)


def _rmsnorm(x, g):
    v = jnp.mean(jnp.square(x), axis=-1, keepdims=True)
    return x * lax.rsqrt(v + EPS) * g


def _rope(t, cf, s_even, s_odd):
    """Interleaved-pair rotary on a per-head (rows, Dh) tile.

    cf     = repeat(cos, 2)                  (multiplies t[j])
    s_even = -sin on even lanes, 0 on odd    (multiplies t[j+1])
    s_odd  = +sin on odd lanes,  0 on even   (multiplies t[j-1])
    Wrap-around lanes of the shifts land on zeroed table entries.
    """
    left = jnp.concatenate([t[:, 1:], t[:, :1]], axis=1)      # left[j]  = t[j+1]
    right = jnp.concatenate([t[:, -1:], t[:, :-1]], axis=1)   # right[j] = t[j-1]
    return t * cf + left * s_even + right * s_odd


def _flash_update(q_sc, k_sc, v_sc, m_sc, l_sc, acc_sc, num_heads, sm_scale):
    """Online-softmax update for the current KV block, fori_loop over heads.

    Scratch is head-major -- (H, rows, Dh) / (H, rows, 1) -- so the head loop
    only needs leading-axis dynamic indexing (no lane-dim dynamic slices and
    no concatenated live per-head contexts)."""
    def body(h, carry):
        q = q_sc[h]                                        # (Sq, Dh)  bf16
        k = k_sc[h]                                        # (Skv, Dh) bf16
        s = lax.dot_general(q, k, (((1,), (1,)), ((), ())),
                            preferred_element_type=jnp.float32) * sm_scale
        m_prev = m_sc[h]                                   # (Sq, 1) f32
        m_new = jnp.maximum(m_prev, jnp.max(s, axis=-1, keepdims=True))
        alpha = jnp.exp(m_prev - m_new)
        p = jnp.exp(s - m_new)                             # f32 softmax
        l_sc[h] = alpha * l_sc[h] + jnp.sum(p, axis=-1, keepdims=True)
        acc_sc[h] = alpha * acc_sc[h] + jnp.dot(
            p.astype(jnp.bfloat16), v_sc[h], preferred_element_type=jnp.float32)
        m_sc[h] = m_new
        return carry

    lax.fori_loop(0, num_heads, body, 0)


def _finalize_ctx(ctx_sc, acc_sc, l_sc, num_heads, head_dim):
    """Normalize per-head accumulators into a lane-contiguous (Sq, D) ctx."""
    for h in range(num_heads):
        inv_l = pl.reciprocal(l_sc[h], approx=True)
        ctx_sc[:, h * head_dim:(h + 1) * head_dim] = (
            acc_sc[h] * inv_l).astype(jnp.bfloat16)


# ------------------------------ Pallas kernels -------------------------------

def self_attn_kernel(xq_ref, xkv_ref, scale_ref, shift_ref, gate_ref,
                     cq_ref, saq_ref, sbq_ref, ck_ref, sak_ref, sbk_ref,
                     wq_ref, bq_ref, wkv_ref, bkv_ref, gq_ref, gk_ref,
                     wo_ref, bo_ref, o_ref,
                     q_sc, k_sc, v_sc, m_sc, l_sc, acc_sc, ctx_sc,
                     *, num_heads, sm_scale):
    """norm1 + AdaLN + Q/KV projections + RMSNorm + RoPE + flash attention
    + out-proj + gated residual.  Grid (B, NQ, NKV); KV axis is the reduction."""
    D = xq_ref.shape[-1]
    Dh = D // num_heads
    kv_step = pl.program_id(2)
    scale = scale_ref[0]
    shift = shift_ref[0]

    @pl.when(kv_step == 0)
    def _init():
        xm = _layernorm(xq_ref[0]) * (1.0 + scale) + shift
        q = jnp.dot(xm.astype(jnp.bfloat16), wq_ref[...],
                    preferred_element_type=jnp.float32) + bq_ref[...]
        q = _rmsnorm(q, gq_ref[...])
        for h in range(num_heads):                          # static split + RoPE
            q_sc[h] = _rope(q[:, h * Dh:(h + 1) * Dh],
                            cq_ref[...], saq_ref[...], sbq_ref[...]
                            ).astype(jnp.bfloat16)
        m_sc[...] = jnp.full(m_sc.shape, NEG_INF, jnp.float32)
        l_sc[...] = jnp.zeros(l_sc.shape, jnp.float32)
        acc_sc[...] = jnp.zeros(acc_sc.shape, jnp.float32)

    # current KV block: norm1 + AdaLN + fused K/V projection + RMSNorm + RoPE
    xmk = _layernorm(xkv_ref[0]) * (1.0 + scale) + shift
    kv = jnp.dot(xmk.astype(jnp.bfloat16), wkv_ref[...],
                 preferred_element_type=jnp.float32) + bkv_ref[...]
    k = _rmsnorm(kv[:, :D], gk_ref[...])
    v = kv[:, D:]
    for h in range(num_heads):
        k_sc[h] = _rope(k[:, h * Dh:(h + 1) * Dh],
                        ck_ref[...], sak_ref[...], sbk_ref[...]
                        ).astype(jnp.bfloat16)
        v_sc[h] = v[:, h * Dh:(h + 1) * Dh].astype(jnp.bfloat16)

    _flash_update(q_sc, k_sc, v_sc, m_sc, l_sc, acc_sc, num_heads, sm_scale)

    @pl.when(kv_step == pl.num_programs(2) - 1)
    def _finalize():
        _finalize_ctx(ctx_sc, acc_sc, l_sc, num_heads, Dh)
        out = jnp.dot(ctx_sc[...], wo_ref[...],
                      preferred_element_type=jnp.float32) + bo_ref[...]
        o_ref[0] = xq_ref[0] + out * gate_ref[0]


def cross_attn_kernel(xq_ref, c_ref, wq_ref, bq_ref, wkv_ref, bkv_ref,
                      gq_ref, gk_ref, wo_ref, bo_ref, o_ref,
                      q_sc, k_sc, v_sc, m_sc, l_sc, acc_sc, ctx_sc,
                      *, num_heads, sm_scale):
    """Cross-attention (norm2 == Identity): Q from hidden, fused K/V from the
    encoder states, flash over Sc blocks, out-proj, ungated residual."""
    D = xq_ref.shape[-1]
    Dh = D // num_heads
    kv_step = pl.program_id(2)

    @pl.when(kv_step == 0)
    def _init():
        q = jnp.dot(xq_ref[0].astype(jnp.bfloat16), wq_ref[...],
                    preferred_element_type=jnp.float32) + bq_ref[...]
        q = _rmsnorm(q, gq_ref[...])
        for h in range(num_heads):
            q_sc[h] = q[:, h * Dh:(h + 1) * Dh].astype(jnp.bfloat16)
        m_sc[...] = jnp.full(m_sc.shape, NEG_INF, jnp.float32)
        l_sc[...] = jnp.zeros(l_sc.shape, jnp.float32)
        acc_sc[...] = jnp.zeros(acc_sc.shape, jnp.float32)

    kvp = jnp.dot(c_ref[0].astype(jnp.bfloat16), wkv_ref[...],
                  preferred_element_type=jnp.float32) + bkv_ref[...]
    k = _rmsnorm(kvp[:, :D], gk_ref[...])
    v = kvp[:, D:]
    for h in range(num_heads):
        k_sc[h] = k[:, h * Dh:(h + 1) * Dh].astype(jnp.bfloat16)
        v_sc[h] = v[:, h * Dh:(h + 1) * Dh].astype(jnp.bfloat16)

    _flash_update(q_sc, k_sc, v_sc, m_sc, l_sc, acc_sc, num_heads, sm_scale)

    @pl.when(kv_step == pl.num_programs(2) - 1)
    def _finalize():
        _finalize_ctx(ctx_sc, acc_sc, l_sc, num_heads, Dh)
        out = jnp.dot(ctx_sc[...], wo_ref[...],
                      preferred_element_type=jnp.float32) + bo_ref[...]
        o_ref[0] = xq_ref[0] + out                     # ungated residual


def ffn_kernel(x_ref, cscale_ref, cshift_ref, cgate_ref,
               w1_ref, b1_ref, w2_ref, b2_ref, o_ref, xm_sc):
    """norm3 + modulation + FFN (gelu-tanh) + gated residual.
    Grid (B, NS, NF); the F axis is the reduction and partial products are
    accumulated directly into the resident f32 output block."""
    f = pl.program_id(2)

    @pl.when(f == 0)
    def _init():
        xm = _layernorm(x_ref[0]) * (1.0 + cscale_ref[0]) + cshift_ref[0]
        xm_sc[...] = xm.astype(jnp.bfloat16)
        # residual + gated b2 up front; gated partials accumulate below
        o_ref[0] = x_ref[0] + b2_ref[...] * cgate_ref[0]

    h = jnp.dot(xm_sc[...], w1_ref[...],
                preferred_element_type=jnp.float32) + b1_ref[...]
    h = 0.5 * h * (1.0 + jnp.tanh(GELU_C * (h + 0.044715 * h * h * h)))  # f32
    o_ref[0] += jnp.dot(h.astype(jnp.bfloat16), w2_ref[...],
                        preferred_element_type=jnp.float32) * cgate_ref[0]


# ------------------------------ wrapper --------------------------------------

def prepare_params(p):
    """One-time weight fusion + bf16 casts (hoisted out of the forward)."""
    bf16, f32 = jnp.bfloat16, jnp.float32
    return {
        'scale_shift_table': p['scale_shift_table'].astype(f32),
        'wq1': p['wq1'].astype(bf16), 'bq1': p['bq1'].astype(f32),
        'wkv1': jnp.concatenate([p['wk1'], p['wv1']], axis=1).astype(bf16),
        'bkv1': jnp.concatenate([p['bk1'], p['bv1']], axis=1).astype(f32),
        'gq1': p['gq1'].astype(f32), 'gk1': p['gk1'].astype(f32),
        'wo1': p['wo1'].astype(bf16), 'bo1': p['bo1'].astype(f32),
        'wq2': p['wq2'].astype(bf16), 'bq2': p['bq2'].astype(f32),
        'wkv2': jnp.concatenate([p['wk2'], p['wv2']], axis=1).astype(bf16),
        'bkv2': jnp.concatenate([p['bk2'], p['bv2']], axis=1).astype(f32),
        'gq2': p['gq2'].astype(f32), 'gk2': p['gk2'].astype(f32),
        'wo2': p['wo2'].astype(bf16), 'bo2': p['bo2'].astype(f32),
        'w1': p['w1'].astype(bf16), 'b1': p['b1'].astype(f32),
        'w2': p['w2'].astype(bf16), 'b2': p['b2'].astype(f32),
    }


def wan_transformer_block(fp, hidden, enc, temb, rope_cos, rope_sin, num_heads,
                          *, sq=None, skv=None, skc=None, tf=None):
    B, S, D = hidden.shape
    Sc = enc.shape[1]
    H = num_heads
    Dh = D // H
    F = fp['w1'].shape[1]
    sm_scale = 1.0 / math.sqrt(Dh)
    f32 = jnp.float32

    hidden = hidden.astype(f32)
    enc = enc.astype(f32)

    # AdaLN modulation (tiny; stays in XLA)
    mod = fp['scale_shift_table'] + temb.astype(f32)                 # (B, 6, D)
    shift_msa, scale_msa, gate_msa, c_shift, c_scale, c_gate = [
        mod[:, i:i + 1, :] for i in range(6)]

    # Per-head rotary tables (S, Dh).  Sign/parity masks are folded in on the
    # host so in-kernel RoPE is three fused multiply-adds (no iota / select).
    cf = jnp.repeat(rope_cos, 2, axis=-1).astype(f32)                # (S, Dh)
    sf = jnp.repeat(rope_sin, 2, axis=-1).astype(f32)
    even = (jnp.arange(Dh) % 2 == 0)
    s_even = jnp.where(even, -sf, 0.0).astype(f32)   # multiplies t[j+1]
    s_odd = jnp.where(even, 0.0, sf).astype(f32)     # multiplies t[j-1]

    # tile sizes (256-multiples when the shapes allow it; full extent otherwise)
    SQ = sq or _pick_tile(S)
    SKV = skv or _pick_tile(S)
    SKC = skc or _pick_tile(Sc)
    TF = tf or _pick_tile(F)
    assert S % SQ == 0 and S % SKV == 0 and Sc % SKC == 0 and F % TF == 0
    NQ, NKV, NKC, NF = S // SQ, S // SKV, Sc // SKC, F // TF

    cp = pltpu.CompilerParams(
        dimension_semantics=("parallel", "parallel", "arbitrary"),
        vmem_limit_bytes=_vmem_limit_bytes())

    def xspec(rows, axis):        # axis 0 -> Q-tile index, 1 -> KV-tile index
        if axis == 0:
            return pl.BlockSpec((1, rows, D), lambda b, q, k: (b, q, 0))
        return pl.BlockSpec((1, rows, D), lambda b, q, k: (b, k, 0))

    def rope_spec(rows, axis):
        if axis == 0:
            return pl.BlockSpec((rows, Dh), lambda b, q, k: (q, 0))
        return pl.BlockSpec((rows, Dh), lambda b, q, k: (k, 0))

    mod_spec = pl.BlockSpec((1, 1, D), lambda b, q, k: (b, 0, 0))

    def wspec(*shape):            # constant weight block, single-buffered
        return _const_spec(shape, lambda b, q, k: (0,) * len(shape))

    def attn_scratch(skv_rows):
        return [pltpu.VMEM((H, SQ, Dh), jnp.bfloat16),       # q  (head-major)
                pltpu.VMEM((H, skv_rows, Dh), jnp.bfloat16),  # k
                pltpu.VMEM((H, skv_rows, Dh), jnp.bfloat16),  # v
                pltpu.VMEM((H, SQ, 1), jnp.float32),          # m
                pltpu.VMEM((H, SQ, 1), jnp.float32),          # l
                pltpu.VMEM((H, SQ, Dh), jnp.float32),         # acc
                pltpu.VMEM((SQ, D), jnp.bfloat16)]            # merged ctx

    out_spec = pl.BlockSpec((1, SQ, D), lambda b, q, k: (b, q, 0))

    # -------- attn1: self-attention with rotary, flash-tiled over KV --------
    attn1_ce = pl.CostEstimate(
        flops=int(B * NQ * (4 * SQ * D * D
                            + NKV * (4 * SKV * D * D + 4 * SQ * SKV * D))),
        transcendentals=int(B * H * S * S),
        bytes_accessed=int(4 * B * S * D * (2 + 2 * NQ) + 2 * 4 * D * D))

    hidden = pl.pallas_call(
        functools.partial(self_attn_kernel, num_heads=H, sm_scale=sm_scale),
        grid=(B, NQ, NKV),
        in_specs=[xspec(SQ, 0), xspec(SKV, 1),
                  mod_spec, mod_spec, mod_spec,
                  rope_spec(SQ, 0), rope_spec(SQ, 0), rope_spec(SQ, 0),
                  rope_spec(SKV, 1), rope_spec(SKV, 1), rope_spec(SKV, 1),
                  wspec(D, D), wspec(1, D), wspec(D, 2 * D), wspec(1, 2 * D),
                  wspec(1, D), wspec(1, D), wspec(D, D), wspec(1, D)],
        out_specs=out_spec,
        out_shape=jax.ShapeDtypeStruct((B, S, D), f32),
        scratch_shapes=attn_scratch(SKV),
        compiler_params=cp,
        cost_estimate=attn1_ce,
    )(hidden, hidden, scale_msa, shift_msa, gate_msa,
      cf, s_even, s_odd, cf, s_even, s_odd,
      fp['wq1'], fp['bq1'], fp['wkv1'], fp['bkv1'],
      fp['gq1'], fp['gk1'], fp['wo1'], fp['bo1'])

    # -------- attn2: cross-attention (norm2 == Identity), flash over Sc ------
    attn2_ce = pl.CostEstimate(
        flops=int(B * NQ * (4 * SQ * D * D
                            + NKC * (4 * SKC * D * D + 4 * SQ * SKC * D))),
        transcendentals=int(B * H * S * Sc),
        bytes_accessed=int(8 * B * S * D + 4 * B * Sc * D * NQ + 2 * 4 * D * D))

    hidden = pl.pallas_call(
        functools.partial(cross_attn_kernel, num_heads=H, sm_scale=sm_scale),
        grid=(B, NQ, NKC),
        in_specs=[xspec(SQ, 0), xspec(SKC, 1),
                  wspec(D, D), wspec(1, D), wspec(D, 2 * D), wspec(1, 2 * D),
                  wspec(1, D), wspec(1, D), wspec(D, D), wspec(1, D)],
        out_specs=out_spec,
        out_shape=jax.ShapeDtypeStruct((B, S, D), f32),
        scratch_shapes=attn_scratch(SKC),
        compiler_params=cp,
        cost_estimate=attn2_ce,
    )(hidden, enc,
      fp['wq2'], fp['bq2'], fp['wkv2'], fp['bkv2'],
      fp['gq2'], fp['gk2'], fp['wo2'], fp['bo2'])

    # -------- norm3 + FFN (S- and F-tiled, accumulated into the output) -----
    ffn_ce = pl.CostEstimate(
        flops=int(4 * B * S * D * F),
        transcendentals=int(B * S * F),
        bytes_accessed=int(8 * B * S * D + 2 * 2 * D * F))

    hidden = pl.pallas_call(
        ffn_kernel,
        grid=(B, NQ, NF),
        in_specs=[pl.BlockSpec((1, SQ, D), lambda b, s, f: (b, s, 0)),
                  pl.BlockSpec((1, 1, D), lambda b, s, f: (b, 0, 0)),
                  pl.BlockSpec((1, 1, D), lambda b, s, f: (b, 0, 0)),
                  pl.BlockSpec((1, 1, D), lambda b, s, f: (b, 0, 0)),
                  pl.BlockSpec((D, TF), lambda b, s, f: (0, f)),
                  pl.BlockSpec((1, TF), lambda b, s, f: (0, f)),
                  pl.BlockSpec((TF, D), lambda b, s, f: (f, 0)),
                  _const_spec((1, D), lambda b, s, f: (0, 0))],
        out_specs=pl.BlockSpec((1, SQ, D), lambda b, s, f: (b, s, 0)),
        out_shape=jax.ShapeDtypeStruct((B, S, D), f32),
        scratch_shapes=[pltpu.VMEM((SQ, D), jnp.bfloat16)],   # modulated input
        compiler_params=cp,
        cost_estimate=ffn_ce,
    )(hidden, c_scale, c_shift, c_gate, fp['w1'], fp['b1'], fp['w2'], fp['b2'])

    return hidden


# ------------------------------ reference ------------------------------------

def reference(p, hidden, enc, temb, rope_cos, rope_sin, H):
    B, S, D = hidden.shape
    Dh = D // H

    def ln(x):
        m = x.mean(-1, keepdims=True)
        v = ((x - m) ** 2).mean(-1, keepdims=True)
        return (x - m) / jnp.sqrt(v + EPS)

    def rms(x, g):
        return x * lax.rsqrt((x ** 2).mean(-1, keepdims=True) + EPS) * g

    def split(t):
        b, s, _ = t.shape
        return t.reshape(b, s, H, Dh).transpose(0, 2, 1, 3)

    def merge(t):
        b, _, s, _ = t.shape
        return t.transpose(0, 2, 1, 3).reshape(b, s, D)

    def rope(x):  # (B,H,S,Dh), interleaved-pair convention
        xe = x[..., 0::2]
        xo = x[..., 1::2]
        c = rope_cos[None, None]
        s = rope_sin[None, None]
        re = xe * c - xo * s
        ro = xe * s + xo * c
        return jnp.stack([re, ro], axis=-1).reshape(x.shape)

    def attn(q, k, v):
        s = jnp.einsum('bhqd,bhkd->bhqk', q, k) / math.sqrt(Dh)
        pr = jax.nn.softmax(s, axis=-1)
        return jnp.einsum('bhqk,bhkd->bhqd', pr, v)

    mod = p['scale_shift_table'] + temb
    shift, scale, gate, c_shift, c_scale, c_gate = [mod[:, i:i + 1] for i in range(6)]

    xm = ln(hidden) * (1 + scale) + shift
    q = rope(split(rms(xm @ p['wq1'] + p['bq1'], p['gq1'])))
    k = rope(split(rms(xm @ p['wk1'] + p['bk1'], p['gk1'])))
    v = split(xm @ p['wv1'] + p['bv1'])
    attn_out = merge(attn(q, k, v)) @ p['wo1'] + p['bo1']
    hidden = hidden + attn_out * gate

    q = split(rms(hidden @ p['wq2'] + p['bq2'], p['gq2']))
    k = split(rms(enc @ p['wk2'] + p['bk2'], p['gk2']))
    v = split(enc @ p['wv2'] + p['bv2'])
    attn_out = merge(attn(q, k, v)) @ p['wo2'] + p['bo2']
    hidden = hidden + attn_out

    xm = ln(hidden) * (1 + c_scale) + c_shift
    h = xm @ p['w1'] + p['b1']
    h = 0.5 * h * (1.0 + jnp.tanh(GELU_C * (h + 0.044715 * h ** 3)))
    hidden = hidden + (h @ p['w2'] + p['b2']) * c_gate
    return hidden


# ------------------------------ params / main --------------------------------

def init_params(key, D, Fdim):
    keys = jax.random.split(key, 16)

    def lin(k, din, dout):
        kw, kb = jax.random.split(k)
        w = jax.random.normal(kw, (din, dout), jnp.float32) / math.sqrt(din)
        b = 0.02 * jax.random.normal(kb, (1, dout), jnp.float32)
        return w, b

    p = {}
    p['scale_shift_table'] = (jax.random.normal(keys[0], (1, 6, D), jnp.float32)
                              / math.sqrt(D))
    p['wq1'], p['bq1'] = lin(keys[1], D, D)
    p['wk1'], p['bk1'] = lin(keys[2], D, D)
    p['wv1'], p['bv1'] = lin(keys[3], D, D)
    p['wo1'], p['bo1'] = lin(keys[4], D, D)
    p['gq1'] = 1.0 + 0.1 * jax.random.normal(keys[5], (1, D), jnp.float32)
    p['gk1'] = 1.0 + 0.1 * jax.random.normal(keys[6], (1, D), jnp.float32)
    p['wq2'], p['bq2'] = lin(keys[7], D, D)
    p['wk2'], p['bk2'] = lin(keys[8], D, D)
    p['wv2'], p['bv2'] = lin(keys[9], D, D)
    p['wo2'], p['bo2'] = lin(keys[10], D, D)
    p['gq2'] = 1.0 + 0.1 * jax.random.normal(keys[11], (1, D), jnp.float32)
    p['gk2'] = 1.0 + 0.1 * jax.random.normal(keys[12], (1, D), jnp.float32)
    p['w1'], p['b1'] = lin(keys[13], D, Fdim)
    p['w2'], p['b2'] = lin(keys[14], Fdim, D)
    return p


if __name__ == "__main__":
    # Small shapes; tile overrides (sq=skv=8, TF=128 via F=384) force
    # NQ=NKV=2 and NF=3 so the flash online-softmax and the F-accumulation
    # paths are genuinely exercised, not just the degenerate single-block case.
    B, S, Sc, D, FFN_DIM, H = 2, 16, 8, 32, 384, 2
    Dh = D // H

    key = jax.random.PRNGKey(0)
    kp, kh, ke, kt = jax.random.split(key, 4)
    params = init_params(kp, D, FFN_DIM)
    hidden = jax.random.normal(kh, (B, S, D), jnp.float32)
    enc = jax.random.normal(ke, (B, Sc, D), jnp.float32)
    temb = jax.random.normal(kt, (B, 6, D), jnp.float32)

    # rotary embedding (cos/sin of the complex rotary_emb), shape (S, Dh//2)
    pos = jnp.arange(S, dtype=jnp.float32)[:, None]
    inv_freq = 1.0 / (10000.0 ** (jnp.arange(0, Dh, 2, dtype=jnp.float32) / Dh))
    ang = pos * inv_freq[None, :]
    rope_cos, rope_sin = jnp.cos(ang), jnp.sin(ang)

    fused = prepare_params(params)
    out = wan_transformer_block(fused, hidden, enc, temb, rope_cos, rope_sin, H,
                                sq=8, skv=8)
    out = jax.block_until_ready(out)

    ref = reference(params, hidden, enc, temb, rope_cos, rope_sin, H)
    assert out.shape == (B, S, D), out.shape
    max_err = float(jnp.max(jnp.abs(out - ref)))
    # bf16 MXU operands with f32 accumulation vs. an all-f32 reference.
    assert jnp.allclose(out, ref, atol=5e-2, rtol=5e-2), max_err

    print("KERNEL_OK")
</pallas_src>

<mosaic_0001>
module attributes {stable_mosaic.version = 11 : i64} {
  func.func @self_attn_kernel(%arg0: i32, %arg1: i32, %arg2: i32, %arg3: memref<1x8x32xf32, #tpu.memory_space<vmem>>, %arg4: memref<1x8x32xf32, #tpu.memory_space<vmem>>, %arg5: memref<1x1x32xf32, #tpu.memory_space<vmem>>, %arg6: memref<1x1x32xf32, #tpu.memory_space<vmem>>, %arg7: memref<1x1x32xf32, #tpu.memory_space<vmem>>, %arg8: memref<8x16xf32, #tpu.memory_space<vmem>>, %arg9: memref<8x16xf32, #tpu.memory_space<vmem>>, %arg10: memref<8x16xf32, #tpu.memory_space<vmem>>, %arg11: memref<8x16xf32, #tpu.memory_space<vmem>>, %arg12: memref<8x16xf32, #tpu.memory_space<vmem>>, %arg13: memref<8x16xf32, #tpu.memory_space<vmem>>, %arg14: memref<32x32xbf16, #tpu.memory_space<vmem>>, %arg15: memref<1x32xf32, #tpu.memory_space<vmem>>, %arg16: memref<32x64xbf16, #tpu.memory_space<vmem>>, %arg17: memref<1x64xf32, #tpu.memory_space<vmem>>, %arg18: memref<1x32xf32, #tpu.memory_space<vmem>>, %arg19: memref<1x32xf32, #tpu.memory_space<vmem>>, %arg20: memref<32x32xbf16, #tpu.memory_space<vmem>>, %arg21: memref<1x32xf32, #tpu.memory_space<vmem>>, %arg22: memref<1x8x32xf32, #tpu.memory_space<vmem>>, %arg23: memref<2x8x16xbf16, #tpu.memory_space<vmem>>, %arg24: memref<2x8x16xbf16, #tpu.memory_space<vmem>>, %arg25: memref<2x8x16xbf16, #tpu.memory_space<vmem>>, %arg26: memref<2x8x1xf32, #tpu.memory_space<vmem>>, %arg27: memref<2x8x1xf32, #tpu.memory_space<vmem>>, %arg28: memref<2x8x16xf32, #tpu.memory_space<vmem>>, %arg29: memref<8x32xbf16, #tpu.memory_space<vmem>>) attributes {dimension_semantics = [#tpu.dimension_semantics<parallel>, #tpu.dimension_semantics<parallel>, #tpu.dimension_semantics<arbitrary>], iteration_bounds = array<i64: 2, 2, 2>, scalar_prefetch = 0 : i64, scratch_operands = 7 : i64, tpu.core_type = #tpu.core_type<tc>, window_params = [{transform_indices = @transform_0, window_bounds = array<i64: 1, 8, 32>}, {transform_indices = @transform_1, window_bounds = array<i64: 1, 8, 32>}, {transform_indices = @transform_2, window_bounds = array<i64: 1, 1, 32>}, {transform_indices = @transform_3, window_bounds = array<i64: 1, 1, 32>}, {transform_indices = @transform_4, window_bounds = array<i64: 1, 1, 32>}, {transform_indices = @transform_5, window_bounds = array<i64: 8, 16>}, {transform_indices = @transform_6, window_bounds = array<i64: 8, 16>}, {transform_indices = @transform_7, window_bounds = array<i64: 8, 16>}, {transform_indices = @transform_8, window_bounds = array<i64: 8, 16>}, {transform_indices = @transform_9, window_bounds = array<i64: 8, 16>}, {transform_indices = @transform_10, window_bounds = array<i64: 8, 16>}, {pipeline_mode = #tpu.pipeline_mode<synchronous>, transform_indices = @transform_11, window_bounds = array<i64: 32, 32>}, {pipeline_mode = #tpu.pipeline_mode<synchronous>, transform_indices = @transform_12, window_bounds = array<i64: 1, 32>}, {pipeline_mode = #tpu.pipeline_mode<synchronous>, transform_indices = @transform_13, window_bounds = array<i64: 32, 64>}, {pipeline_mode = #tpu.pipeline_mode<synchronous>, transform_indices = @transform_14, window_bounds = array<i64: 1, 64>}, {pipeline_mode = #tpu.pipeline_mode<synchronous>, transform_indices = @transform_15, window_bounds = array<i64: 1, 32>}, {pipeline_mode = #tpu.pipeline_mode<synchronous>, transform_indices = @transform_16, window_bounds = array<i64: 1, 32>}, {pipeline_mode = #tpu.pipeline_mode<synchronous>, transform_indices = @transform_17, window_bounds = array<i64: 32, 32>}, {pipeline_mode = #tpu.pipeline_mode<synchronous>, transform_indices = @transform_18, window_bounds = array<i64: 1, 32>}, {transform_indices = @transform_19, window_bounds = array<i64: 1, 8, 32>}]} {
    %c0 = arith.constant 0 : index
    %c0_0 = arith.constant 0 : index
    %c0_1 = arith.constant 0 : index
    %0 = vector.load %arg5[%c0, %c0_0, %c0_1] : memref<1x1x32xf32, #tpu.memory_space<vmem>>, vector<1x1x32xf32>
    %1 = vector.shape_cast %0 : vector<1x1x32xf32> to vector<1x32xf32>
    %c0_2 = arith.constant 0 : index
    %c0_3 = arith.constant 0 : index
    %c0_4 = arith.constant 0 : index
    %2 = vector.load %arg6[%c0_2, %c0_3, %c0_4] : memref<1x1x32xf32, #tpu.memory_space<vmem>>, vector<1x1x32xf32>
    %3 = vector.shape_cast %2 : vector<1x1x32xf32> to vector<1x32xf32>
    %c0_i32 = arith.constant 0 : i32
    %4 = arith.cmpi eq, %arg2, %c0_i32 : i32
    %5 = arith.extui %4 : i1 to i32
    %c0_i32_5 = arith.constant 0 : i32
    %6 = arith.cmpi ne, %5, %c0_i32_5 : i32
    scf.if %6 {
      %c0_51 = arith.constant 0 : index
      %c0_52 = arith.constant 0 : index
      %c0_53 = arith.constant 0 : index
      %106 = vector.load %arg3[%c0_51, %c0_52, %c0_53] : memref<1x8x32xf32, #tpu.memory_space<vmem>>, vector<1x8x32xf32>
      %107 = vector.shape_cast %106 : vector<1x8x32xf32> to vector<8x32xf32>
      %cst_54 = arith.constant dense<0.000000e+00> : vector<8xf32>
      %108 = vector.multi_reduction <add>, %107, %cst_54 [1] : vector<8x32xf32> to vector<8xf32>
      %109 = vector.shape_cast %108 : vector<8xf32> to vector<8x1xf32>
      %cst_55 = arith.constant 3.200000e+01 : f32
      %110 = vector.broadcast %cst_55 : f32 to vector<8x1xf32>
      %111 = arith.divf %109, %110 : vector<8x1xf32>
      %112 = vector.broadcast %111 : vector<8x1xf32> to vector<8x32xf32>
      %113 = arith.subf %107, %112 : vector<8x32xf32>
      %114 = arith.mulf %113, %113 : vector<8x32xf32>
      %cst_56 = arith.constant dense<0.000000e+00> : vector<8xf32>
      %115 = vector.multi_reduction <add>, %114, %cst_56 [1] : vector<8x32xf32> to vector<8xf32>
      %116 = vector.shape_cast %115 : vector<8xf32> to vector<8x1xf32>
      %cst_57 = arith.constant 3.200000e+01 : f32
      %117 = vector.broadcast %cst_57 : f32 to vector<8x1xf32>
      %118 = arith.divf %116, %117 : vector<8x1xf32>
      %119 = vector.broadcast %111 : vector<8x1xf32> to vector<8x32xf32>
      %120 = arith.subf %107, %119 : vector<8x32xf32>
      %cst_58 = arith.constant 9.99999997E-7 : f32
      %121 = vector.broadcast %cst_58 : f32 to vector<8x1xf32>
      %122 = arith.addf %118, %121 : vector<8x1xf32>
      %123 = math.rsqrt %122 : vector<8x1xf32>
      %124 = vector.broadcast %123 : vector<8x1xf32> to vector<8x32xf32>
      %125 = arith.mulf %120, %124 : vector<8x32xf32>
      %cst_59 = arith.constant 1.000000e+00 : f32
      %126 = vector.broadcast %cst_59 : f32 to vector<1x32xf32>
      %127 = arith.addf %126, %1 : vector<1x32xf32>
      %128 = vector.broadcast %127 : vector<1x32xf32> to vector<8x32xf32>
      %129 = arith.mulf %125, %128 : vector<8x32xf32>
      %130 = vector.broadcast %3 : vector<1x32xf32> to vector<8x32xf32>
      %131 = arith.addf %129, %130 : vector<8x32xf32>
      %132 = arith.truncf %131 : vector<8x32xf32> to vector<8x32xbf16>
      %c0_60 = arith.constant 0 : index
      %c0_61 = arith.constant 0 : index
      %133 = vector.load %arg14[%c0_60, %c0_61] : memref<32x32xbf16, #tpu.memory_space<vmem>>, vector<32x32xbf16>
      %cst_62 = arith.constant dense<0.000000e+00> : vector<8x32xf32>
      %134 = tpu.matmul %132, %133, %cst_62 {dimension_numbers = #tpu.dot_dimension_numbers<[1], [0], [0], [1], [0, 0, 1, 1], [], []>} : vector<8x32xbf16>, vector<32x32xbf16>, vector<8x32xf32> -> vector<8x32xf32>
      %c0_63 = arith.constant 0 : index
      %c0_64 = arith.constant 0 : index
      %135 = vector.load %arg15[%c0_63, %c0_64] : memref<1x32xf32, #tpu.memory_space<vmem>>, vector<1x32xf32>
      %136 = vector.broadcast %135 : vector<1x32xf32> to vector<8x32xf32>
      %137 = arith.addf %134, %136 : vector<8x32xf32>
      %c0_65 = arith.constant 0 : index
      %c0_66 = arith.constant 0 : index
      %138 = vector.load %arg18[%c0_65, %c0_66] : memref<1x32xf32, #tpu.memory_space<vmem>>, vector<1x32xf32>
      %139 = arith.mulf %137, %137 : vector<8x32xf32>
      %cst_67 = arith.constant dense<0.000000e+00> : vector<8xf32>
      %140 = vector.multi_reduction <add>, %139, %cst_67 [1] : vector<8x32xf32> to vector<8xf32>
      %141 = vector.shape_cast %140 : vector<8xf32> to vector<8x1xf32>
      %cst_68 = arith.constant 3.200000e+01 : f32
      %142 = vector.broadcast %cst_68 : f32 to vector<8x1xf32>
      %143 = arith.divf %141, %142 : vector<8x1xf32>
      %cst_69 = arith.constant 9.99999997E-7 : f32
      %144 = vector.broadcast %cst_69 : f32 to vector<8x1xf32>
      %145 = arith.addf %143, %144 : vector<8x1xf32>
      %146 = math.rsqrt %145 : vector<8x1xf32>
      %147 = vector.broadcast %146 : vector<8x1xf32> to vector<8x32xf32>
      %148 = arith.mulf %137, %147 : vector<8x32xf32>
      %149 = vector.broadcast %138 : vector<1x32xf32> to vector<8x32xf32>
      %150 = arith.mulf %148, %149 : vector<8x32xf32>
      %151 = vector.extract_strided_slice %150 {offsets = [0, 0], sizes = [8, 16], strides = [1, 1]} : vector<8x32xf32> to vector<8x16xf32>
      %c0_70 = arith.constant 0 : index
      %c0_71 = arith.constant 0 : index
      %152 = vector.load %arg8[%c0_70, %c0_71] : memref<8x16xf32, #tpu.memory_space<vmem>>, vector<8x16xf32>
      %c0_72 = arith.constant 0 : index
      %c0_73 = arith.constant 0 : index
      %153 = vector.load %arg9[%c0_72, %c0_73] : memref<8x16xf32, #tpu.memory_space<vmem>>, vector<8x16xf32>
      %c0_74 = arith.constant 0 : index
      %c0_75 = arith.constant 0 : index
      %154 = vector.load %arg10[%c0_74, %c0_75] : memref<8x16xf32, #tpu.memory_space<vmem>>, vector<8x16xf32>
      %155 = vector.extract_strided_slice %151 {offsets = [0, 1], sizes = [8, 15], strides = [1, 1]} : vector<8x16xf32> to vector<8x15xf32>
      %156 = vector.extract_strided_slice %151 {offsets = [0, 0], sizes = [8, 1], strides = [1, 1]} : vector<8x16xf32> to vector<8x1xf32>
      %157 = tpu.concatenate %155, %156 in 1 : vector<8x15xf32>, vector<8x1xf32> -> vector<8x16xf32>
      %158 = vector.extract_strided_slice %151 {offsets = [0, 15], sizes = [8, 1], strides = [1, 1]} : vector<8x16xf32> to vector<8x1xf32>
      %159 = vector.extract_strided_slice %151 {offsets = [0, 0], sizes = [8, 15], strides = [1, 1]} : vector<8x16xf32> to vector<8x15xf32>
      %160 = tpu.concatenate %158, %159 in 1 : vector<8x1xf32>, vector<8x15xf32> -> vector<8x16xf32>
      %161 = arith.mulf %151, %152 : vector<8x16xf32>
      %162 = arith.mulf %157, %153 : vector<8x16xf32>
      %163 = arith.addf %161, %162 : vector<8x16xf32>
      %164 = arith.mulf %160, %154 : vector<8x16xf32>
      %165 = arith.addf %163, %164 : vector<8x16xf32>
      %166 = arith.truncf %165 : vector<8x16xf32> to vector<8x16xbf16>
      %c0_76 = arith.constant 0 : index
      %c0_77 = arith.constant 0 : index
      %c0_78 = arith.constant 0 : index
      %167 = vector.load %arg23[%c0_76, %c0_77, %c0_78] : memref<2x8x16xbf16, #tpu.memory_space<vmem>>, vector<1x8x16xbf16>
      %168 = vector.shape_cast %167 : vector<1x8x16xbf16> to vector<8x16xbf16>
      %169 = vector.shape_cast %166 : vector<8x16xbf16> to vector<1x8x16xbf16>
      tpu.vector_store %arg23[%c0_76, %c0_77, %c0_78], %169 {strides = array<i32>} : memref<2x8x16xbf16, #tpu.memory_space<vmem>>, vector<1x8x16xbf16>,
      %170 = vector.extract_strided_slice %150 {offsets = [0, 16], sizes = [8, 16], strides = [1, 1]} : vector<8x32xf32> to vector<8x16xf32>
      %c0_79 = arith.constant 0 : index
      %c0_80 = arith.constant 0 : index
      %171 = vector.load %arg8[%c0_79, %c0_80] : memref<8x16xf32, #tpu.memory_space<vmem>>, vector<8x16xf32>
      %c0_81 = arith.constant 0 : index
      %c0_82 = arith.constant 0 : index
      %172 = vector.load %arg9[%c0_81, %c0_82] : memref<8x16xf32, #tpu.memory_space<vmem>>, vector<8x16xf32>
      %c0_83 = arith.constant 0 : index
      %c0_84 = arith.constant 0 : index
      %173 = vector.load %arg10[%c0_83, %c0_84] : memref<8x16xf32, #tpu.memory_space<vmem>>, vector<8x16xf32>
      %174 = vector.extract_strided_slice %170 {offsets = [0, 1], sizes = [8, 15], strides = [1, 1]} : vector<8x16xf32> to vector<8x15xf32>
      %175 = vector.extract_strided_slice %170 {offsets = [0, 0], sizes = [8, 1], strides = [1, 1]} : vector<8x16xf32> to vector<8x1xf32>
      %176 = tpu.concatenate %174, %175 in 1 : vector<8x15xf32>, vector<8x1xf32> -> vector<8x16xf32>
      %177 = vector.extract_strided_slice %170 {offsets = [0, 15], sizes = [8, 1], strides = [1, 1]} : vector<8x16xf32> to vector<8x1xf32>
      %178 = vector.extract_strided_slice %170 {offsets = [0, 0], sizes = [8, 15], strides = [1, 1]} : vector<8x16xf32> to vector<8x15xf32>
      %179 = tpu.concatenate %177, %178 in 1 : vector<8x1xf32>, vector<8x15xf32> -> vector<8x16xf32>
      %180 = arith.mulf %170, %171 : vector<8x16xf32>
      %181 = arith.mulf %176, %172 : vector<8x16xf32>
      %182 = arith.addf %180, %181 : vector<8x16xf32>
      %183 = arith.mulf %179, %173 : vector<8x16xf32>
      %184 = arith.addf %182, %183 : vector<8x16xf32>
      %185 = arith.truncf %184 : vector<8x16xf32> to vector<8x16xbf16>
      %c1_85 = arith.constant 1 : index
      %c0_86 = arith.constant 0 : index
      %c0_87 = arith.constant 0 : index
      %186 = vector.load %arg23[%c1_85, %c0_86, %c0_87] : memref<2x8x16xbf16, #tpu.memory_space<vmem>>, vector<1x8x16xbf16>
      %187 = vector.shape_cast %186 : vector<1x8x16xbf16> to vector<8x16xbf16>
      %188 = vector.shape_cast %185 : vector<8x16xbf16> to vector<1x8x16xbf16>
      tpu.vector_store %arg23[%c1_85, %c0_86, %c0_87], %188 {strides = array<i32>} : memref<2x8x16xbf16, #tpu.memory_space<vmem>>, vector<1x8x16xbf16>,
      %cst_88 = arith.constant -1.000000e+30 : f32
      %189 = vector.broadcast %cst_88 : f32 to vector<2x8x1xf32>
      %c0_89 = arith.constant 0 : index
      %c0_90 = arith.constant 0 : index
      %c0_91 = arith.constant 0 : index
      %190 = vector.load %arg26[%c0_89, %c0_90, %c0_91] : memref<2x8x1xf32, #tpu.memory_space<vmem>>, vector<2x8x1xf32>
      tpu.vector_store %arg26[%c0_89, %c0_90, %c0_91], %189 {strides = array<i32>} : memref<2x8x1xf32, #tpu.memory_space<vmem>>, vector<2x8x1xf32>,
      %cst_92 = arith.constant 0.000000e+00 : f32
      %191 = vector.broadcast %cst_92 : f32 to vector<2x8x1xf32>
      %c0_93 = arith.constant 0 : index
      %c0_94 = arith.constant 0 : index
      %c0_95 = arith.constant 0 : index
      %192 = vector.load %arg27[%c0_93, %c0_94, %c0_95] : memref<2x8x1xf32, #tpu.memory_space<vmem>>, vector<2x8x1xf32>
      tpu.vector_store %arg27[%c0_93, %c0_94, %c0_95], %191 {strides = array<i32>} : memref<2x8x1xf32, #tpu.memory_space<vmem>>, vector<2x8x1xf32>,
      %cst_96 = arith.constant 0.000000e+00 : f32
      %193 = vector.broadcast %cst_96 : f32 to vector<2x8x16xf32>
      %c0_97 = arith.constant 0 : index
      %c0_98 = arith.constant 0 : index
      %c0_99 = arith.constant 0 : index
      %194 = vector.load %arg28[%c0_97, %c0_98, %c0_99] : memref<2x8x16xf32, #tpu.memory_space<vmem>>, vector<2x8x16xf32>
      tpu.vector_store %arg28[%c0_97, %c0_98, %c0_99], %193 {strides = array<i32>} : memref<2x8x16xf32, #tpu.memory_space<vmem>>, vector<2x8x16xf32>,
    } else {
    }
    %c0_6 = arith.constant 0 : index
    %c0_7 = arith.constant 0 : index
    %c0_8 = arith.constant 0 : index
    %7 = vector.load %arg4[%c0_6, %c0_7, %c0_8] : memref<1x8x32xf32, #tpu.memory_space<vmem>>, vector<1x8x32xf32>
    %8 = vector.shape_cast %7 : vector<1x8x32xf32> to vector<8x32xf32>
    %cst = arith.constant dense<0.000000e+00> : vector<8xf32>
    %9 = vector.multi_reduction <add>, %8, %cst [1] : vector<8x32xf32> to vector<8xf32>
    %10 = vector.shape_cast %9 : vector<8xf32> to vector<8x1xf32>
    %cst_9 = arith.constant 3.200000e+01 : f32
    %11 = vector.broadcast %cst_9 : f32 to vector<8x1xf32>
    %12 = arith.divf %10, %11 : vector<8x1xf32>
    %13 = vector.broadcast %12 : vector<8x1xf32> to vector<8x32xf32>
    %14 = arith.subf %8, %13 : vector<8x32xf32>
    %15 = arith.mulf %14, %14 : vector<8x32xf32>
    %cst_10 = arith.constant dense<0.000000e+00> : vector<8xf32>
    %16 = vector.multi_reduction <add>, %15, %cst_10 [1] : vector<8x32xf32> to vector<8xf32>
    %17 = vector.shape_cast %16 : vector<8xf32> to vector<8x1xf32>
    %cst_11 = arith.constant 3.200000e+01 : f32
    %18 = vector.broadcast %cst_11 : f32 to vector<8x1xf32>
    %19 = arith.divf %17, %18 : vector<8x1xf32>
    %20 = vector.broadcast %12 : vector<8x1xf32> to vector<8x32xf32>
    %21 = arith.subf %8, %20 : vector<8x32xf32>
    %cst_12 = arith.constant 9.99999997E-7 : f32
    %22 = vector.broadcast %cst_12 : f32 to vector<8x1xf32>
    %23 = arith.addf %19, %22 : vector<8x1xf32>
    %24 = math.rsqrt %23 : vector<8x1xf32>
    %25 = vector.broadcast %24 : vector<8x1xf32> to vector<8x32xf32>
    %26 = arith.mulf %21, %25 : vector<8x32xf32>
    %cst_13 = arith.constant 1.000000e+00 : f32
    %27 = vector.broadcast %cst_13 : f32 to vector<1x32xf32>
    %28 = arith.addf %27, %1 : vector<1x32xf32>
    %29 = vector.broadcast %28 : vector<1x32xf32> to vector<8x32xf32>
    %30 = arith.mulf %26, %29 : vector<8x32xf32>
    %31 = vector.broadcast %3 : vector<1x32xf32> to vector<8x32xf32>
    %32 = arith.addf %30, %31 : vector<8x32xf32>
    %33 = arith.truncf %32 : vector<8x32xf32> to vector<8x32xbf16>
    %c0_14 = arith.constant 0 : index
    %c0_15 = arith.constant 0 : index
    %34 = vector.load %arg16[%c0_14, %c0_15] : memref<32x64xbf16, #tpu.memory_space<vmem>>, vector<32x64xbf16>
    %cst_16 = arith.constant dense<0.000000e+00> : vector<8x64xf32>
    %35 = tpu.matmul %33, %34, %cst_16 {dimension_numbers = #tpu.dot_dimension_numbers<[1], [0], [0], [1], [0, 0, 1, 1], [], []>} : vector<8x32xbf16>, vector<32x64xbf16>, vector<8x64xf32> -> vector<8x64xf32>
    %c0_17 = arith.constant 0 : index
    %c0_18 = arith.constant 0 : index
    %36 = vector.load %arg17[%c0_17, %c0_18] : memref<1x64xf32, #tpu.memory_space<vmem>>, vector<1x64xf32>
    %37 = vector.broadcast %36 : vector<1x64xf32> to vector<8x64xf32>
    %38 = arith.addf %35, %37 : vector<8x64xf32>
    %39 = vector.extract_strided_slice %38 {offsets = [0, 0], sizes = [8, 32], strides = [1, 1]} : vector<8x64xf32> to vector<8x32xf32>
    %c0_19 = arith.constant 0 : index
    %c0_20 = arith.constant 0 : index
    %40 = vector.load %arg19[%c0_19, %c0_20] : memref<1x32xf32, #tpu.memory_space<vmem>>, vector<1x32xf32>
    %41 = arith.mulf %39, %39 : vector<8x32xf32>
    %cst_21 = arith.constant dense<0.000000e+00> : vector<8xf32>
    %42 = vector.multi_reduction <add>, %41, %cst_21 [1] : vector<8x32xf32> to vector<8xf32>
    %43 = vector.shape_cast %42 : vector<8xf32> to vector<8x1xf32>
    %cst_22 = arith.constant 3.200000e+01 : f32
    %44 = vector.broadcast %cst_22 : f32 to vector<8x1xf32>
    %45 = arith.divf %43, %44 : vector<8x1xf32>
    %cst_23 = arith.constant 9.99999997E-7 : f32
    %46 = vector.broadcast %cst_23 : f32 to vector<8x1xf32>
    %47 = arith.addf %45, %46 : vector<8x1xf32>
    %48 = math.rsqrt %47 : vector<8x1xf32>
    %49 = vector.broadcast %48 : vector<8x1xf32> to vector<8x32xf32>
    %50 = arith.mulf %39, %49 : vector<8x32xf32>
    %51 = vector.broadcast %40 : vector<1x32xf32> to vector<8x32xf32>
    %52 = arith.mulf %50, %51 : vector<8x32xf32>
    %53 = vector.extract_strided_slice %38 {offsets = [0, 32], sizes = [8, 32], strides = [1, 1]} : vector<8x64xf32> to vector<8x32xf32>
    %54 = vector.extract_strided_slice %52 {offsets = [0, 0], sizes = [8, 16], strides = [1, 1]} : vector<8x32xf32> to vector<8x16xf32>
    %c0_24 = arith.constant 0 : index
    %c0_25 = arith.constant 0 : index
    %55 = vector.load %arg11[%c0_24, %c0_25] : memref<8x16xf32, #tpu.memory_space<vmem>>, vector<8x16xf32>
    %c0_26 = arith.constant 0 : index
    %c0_27 = arith.constant 0 : index
    %56 = vector.load %arg12[%c0_26, %c0_27] : memref<8x16xf32, #tpu.memory_space<vmem>>, vector<8x16xf32>
    %c0_28 = arith.constant 0 : index
    %c0_29 = arith.constant 0 : index
    %57 = vector.load %arg13[%c0_28, %c0_29] : memref<8x16xf32, #tpu.memory_space<vmem>>, vector<8x16xf32>
    %58 = vector.extract_strided_slice %54 {offsets = [0, 1], sizes = [8, 15], strides = [1, 1]} : vector<8x16xf32> to vector<8x15xf32>
    %59 = vector.extract_strided_slice %54 {offsets = [0, 0], sizes = [8, 1], strides = [1, 1]} : vector<8x16xf32> to vector<8x1xf32>
    %60 = tpu.concatenate %58, %59 in 1 : vector<8x15xf32>, vector<8x1xf32> -> vector<8x16xf32>
    %61 = vector.extract_strided_slice %54 {offsets = [0, 15], sizes = [8, 1], strides = [1, 1]} : vector<8x16xf32> to vector<8x1xf32>
    %62 = vector.extract_strided_slice %54 {offsets = [0, 0], sizes = [8, 15], strides = [1, 1]} : vector<8x16xf32> to vector<8x15xf32>
    %63 = tpu.concatenate %61, %62 in 1 : vector<8x1xf32>, vector<8x15xf32> -> vector<8x16xf32>
    %64 = arith.mulf %54, %55 : vector<8x16xf32>
    %65 = arith.mulf %60, %56 : vector<8x16xf32>
    %66 = arith.addf %64, %65 : vector<8x16xf32>
    %67 = arith.mulf %63, %57 : vector<8x16xf32>
    %68 = arith.addf %66, %67 : vector<8x16xf32>
    %69 = arith.truncf %68 : vector<8x16xf32> to vector<8x16xbf16>
    %c0_30 = arith.constant 0 : index
    %c0_31 = arith.constant 0 : index
    %c0_32 = arith.constant 0 : index
    %70 = vector.load %arg24[%c0_30, %c0_31, %c0_32] : memref<2x8x16xbf16, #tpu.memory_space<vmem>>, vector<1x8x16xbf16>
    %71 = vector.shape_cast %70 : vector<1x8x16xbf16> to vector<8x16xbf16>
    %72 = vector.shape_cast %69 : vector<8x16xbf16> to vector<1x8x16xbf16>
    tpu.vector_store %arg24[%c0_30, %c0_31, %c0_32], %72 {strides = array<i32>} : memref<2x8x16xbf16, #tpu.memory_space<vmem>>, vector<1x8x16xbf16>,
    %73 = vector.extract_strided_slice %53 {offsets = [0, 0], sizes = [8, 16], strides = [1, 1]} : vector<8x32xf32> to vector<8x16xf32>
    %74 = arith.truncf %73 : vector<8x16xf32> to vector<8x16xbf16>
    %c0_33 = arith.constant 0 : index
    %c0_34 = arith.constant 0 : index
    %c0_35 = arith.constant 0 : index
    %75 = vector.load %arg25[%c0_33, %c0_34, %c0_35] : memref<2x8x16xbf16, #tpu.memory_space<vmem>>, vector<1x8x16xbf16>
    %76 = vector.shape_cast %75 : vector<1x8x16xbf16> to vector<8x16xbf16>
    %77 = vector.shape_cast %74 : vector<8x16xbf16> to vector<1x8x16xbf16>
    tpu.vector_store %arg25[%c0_33, %c0_34, %c0_35], %77 {strides = array<i32>} : memref<2x8x16xbf16, #tpu.memory_space<vmem>>, vector<1x8x16xbf16>,
    %78 = vector.extract_strided_slice %52 {offsets = [0, 16], sizes = [8, 16], strides = [1, 1]} : vector<8x32xf32> to vector<8x16xf32>
    %c0_36 = arith.constant 0 : index
    %c0_37 = arith.constant 0 : index
    %79 = vector.load %arg11[%c0_36, %c0_37] : memref<8x16xf32, #tpu.memory_space<vmem>>, vector<8x16xf32>
    %c0_38 = arith.constant 0 : index
    %c0_39 = arith.constant 0 : index
    %80 = vector.load %arg12[%c0_38, %c0_39] : memref<8x16xf32, #tpu.memory_space<vmem>>, vector<8x16xf32>
    %c0_40 = arith.constant 0 : index
    %c0_41 = arith.constant 0 : index
    %81 = vector.load %arg13[%c0_40, %c0_41] : memref<8x16xf32, #tpu.memory_space<vmem>>, vector<8x16xf32>
    %82 = vector.extract_strided_slice %78 {offsets = [0, 1], sizes = [8, 15], strides = [1, 1]} : vector<8x16xf32> to vector<8x15xf32>
    %83 = vector.extract_strided_slice %78 {offsets = [0, 0], sizes = [8, 1], strides = [1, 1]} : vector<8x16xf32> to vector<8x1xf32>
    %84 = tpu.concatenate %82, %83 in 1 : vector<8x15xf32>, vector<8x1xf32> -> vector<8x16xf32>
    %85 = vector.extract_strided_slice %78 {offsets = [0, 15], sizes = [8, 1], strides = [1, 1]} : vector<8x16xf32> to vector<8x1xf32>
    %86 = vector.extract_strided_slice %78 {offsets = [0, 0], sizes = [8, 15], strides = [1, 1]} : vector<8x16xf32> to vector<8x15xf32>
    %87 = tpu.concatenate %85, %86 in 1 : vector<8x1xf32>, vector<8x15xf32> -> vector<8x16xf32>
    %88 = arith.mulf %78, %79 : vector<8x16xf32>
    %89 = arith.mulf %84, %80 : vector<8x16xf32>
    %90 = arith.addf %88, %89 : vector<8x16xf32>
    %91 = arith.mulf %87, %81 : vector<8x16xf32>
    %92 = arith.addf %90, %91 : vector<8x16xf32>
    %93 = arith.truncf %92 : vector<8x16xf32> to vector<8x16xbf16>
    %c1 = arith.constant 1 : index
    %c0_42 = arith.constant 0 : index
    %c0_43 = arith.constant 0 : index
    %94 = vector.load %arg24[%c1, %c0_42, %c0_43] : memref<2x8x16xbf16, #tpu.memory_space<vmem>>, vector<1x8x16xbf16>
    %95 = vector.shape_cast %94 : vector<1x8x16xbf16> to vector<8x16xbf16>
    %96 = vector.shape_cast %93 : vector<8x16xbf16> to vector<1x8x16xbf16>
    tpu.vector_store %arg24[%c1, %c0_42, %c0_43], %96 {strides = array<i32>} : memref<2x8x16xbf16, #tpu.memory_space<vmem>>, vector<1x8x16xbf16>,
    %97 = vector.extract_strided_slice %53 {offsets = [0, 16], sizes = [8, 16], strides = [1, 1]} : vector<8x32xf32> to vector<8x16xf32>
    %98 = arith.truncf %97 : vector<8x16xf32> to vector<8x16xbf16>
    %c1_44 = arith.constant 1 : index
    %c0_45 = arith.constant 0 : index
    %c0_46 = arith.constant 0 : index
    %99 = vector.load %arg25[%c1_44, %c0_45, %c0_46] : memref<2x8x16xbf16, #tpu.memory_space<vmem>>, vector<1x8x16xbf16>
    %100 = vector.shape_cast %99 : vector<1x8x16xbf16> to vector<8x16xbf16>
    %101 = vector.shape_cast %98 : vector<8x16xbf16> to vector<1x8x16xbf16>
    tpu.vector_store %arg25[%c1_44, %c0_45, %c0_46], %101 {strides = array<i32>} : memref<2x8x16xbf16, #tpu.memory_space<vmem>>, vector<1x8x16xbf16>,
    %c0_i32_47 = arith.constant 0 : i32
    %c2_i32 = arith.constant 2 : i32
    %102 = arith.addi %c0_i32_47, %c2_i32 : i32
    %c1_i32 = arith.constant 1 : i32
    scf.for %arg30 = %c0_i32_47 to %102 step %c1_i32  : i32 {
      %106 = arith.index_cast %arg30 : i32 to index
      %c0_51 = arith.constant 0 : index
      %c0_52 = arith.constant 0 : index
      %107 = vector.load %arg23[%106, %c0_51, %c0_52] : memref<2x8x16xbf16, #tpu.memory_space<vmem>>, vector<1x8x16xbf16>
      %108 = vector.shape_cast %107 : vector<1x8x16xbf16> to vector<8x16xbf16>
      %109 = arith.index_cast %arg30 : i32 to index
      %c0_53 = arith.constant 0 : index
      %c0_54 = arith.constant 0 : index
      %110 = vector.load %arg24[%109, %c0_53, %c0_54] : memref<2x8x16xbf16, #tpu.memory_space<vmem>>, vector<1x8x16xbf16>
      %111 = vector.shape_cast %110 : vector<1x8x16xbf16> to vector<8x16xbf16>
      %cst_55 = arith.constant dense<0.000000e+00> : vector<8x8xf32>
      %112 = tpu.matmul %108, %111, %cst_55 {dimension_numbers = #tpu.dot_dimension_numbers<[1], [1], [0], [0], [0, 0, 1, 0], [], []>} : vector<8x16xbf16>, vector<8x16xbf16>, vector<8x8xf32> -> vector<8x8xf32>
      %cst_56 = arith.constant 2.500000e-01 : f32
      %113 = vector.broadcast %cst_56 : f32 to vector<8x8xf32>
      %114 = arith.mulf %112, %113 : vector<8x8xf32>
      %115 = arith.index_cast %arg30 : i32 to index
      %c0_57 = arith.constant 0 : index
      %c0_58 = arith.constant 0 : index
      %116 = vector.load %arg26[%115, %c0_57, %c0_58] : memref<2x8x1xf32, #tpu.memory_space<vmem>>, vector<1x8x1xf32>
      %117 = vector.shape_cast %116 : vector<1x8x1xf32> to vector<8x1xf32>
      %cst_59 = arith.constant dense<0xFF800000> : vector<8xf32>
      %118 = vector.multi_reduction <maximumf>, %114, %cst_59 [1] : vector<8x8xf32> to vector<8xf32>
      %119 = vector.shape_cast %118 : vector<8xf32> to vector<8x1xf32>
      %120 = arith.maximumf %117, %119 : vector<8x1xf32>
      %121 = arith.subf %117, %120 : vector<8x1xf32>
      %122 = math.exp %121 : vector<8x1xf32>
      %123 = vector.broadcast %120 : vector<8x1xf32> to vector<8x8xf32>
      %124 = arith.subf %114, %123 : vector<8x8xf32>
      %125 = math.exp %124 : vector<8x8xf32>
      %126 = arith.index_cast %arg30 : i32 to index
      %c0_60 = arith.constant 0 : index
      %c0_61 = arith.constant 0 : index
      %127 = vector.load %arg27[%126, %c0_60, %c0_61] : memref<2x8x1xf32, #tpu.memory_space<vmem>>, vector<1x8x1xf32>
      %128 = vector.shape_cast %127 : vector<1x8x1xf32> to vector<8x1xf32>
      %129 = arith.mulf %122, %128 : vector<8x1xf32>
      %cst_62 = arith.constant dense<0.000000e+00> : vector<8xf32>
      %130 = vector.multi_reduction <add>, %125, %cst_62 [1] : vector<8x8xf32> to vector<8xf32>
      %131 = vector.shape_cast %130 : vector<8xf32> to vector<8x1xf32>
      %132 = arith.addf %129, %131 : vector<8x1xf32>
      %133 = arith.index_cast %arg30 : i32 to index
      %c0_63 = arith.constant 0 : index
      %c0_64 = arith.constant 0 : index
      %134 = vector.load %arg27[%133, %c0_63, %c0_64] : memref<2x8x1xf32, #tpu.memory_space<vmem>>, vector<1x8x1xf32>
      %135 = vector.shape_cast %134 : vector<1x8x1xf32> to vector<8x1xf32>
      %136 = vector.shape_cast %132 : vector<8x1xf32> to vector<1x8x1xf32>
      tpu.vector_store %arg27[%133, %c0_63, %c0_64], %136 {strides = array<i32>} : memref<2x8x1xf32, #tpu.memory_space<vmem>>, vector<1x8x1xf32>,
      %137 = arith.index_cast %arg30 : i32 to index
      %c0_65 = arith.constant 0 : index
      %c0_66 = arith.constant 0 : index
      %138 = vector.load %arg28[%137, %c0_65, %c0_66] : memref<2x8x16xf32, #tpu.memory_space<vmem>>, vector<1x8x16xf32>
      %139 = vector.shape_cast %138 : vector<1x8x16xf32> to vector<8x16xf32>
      %140 = vector.broadcast %122 : vector<8x1xf32> to vector<8x16xf32>
      %141 = arith.mulf %140, %139 : vector<8x16xf32>
      %142 = arith.truncf %125 : vector<8x8xf32> to vector<8x8xbf16>
      %143 = arith.index_cast %arg30 : i32 to index
      %c0_67 = arith.constant 0 : index
      %c0_68 = arith.constant 0 : index
      %144 = vector.load %arg25[%143, %c0_67, %c0_68] : memref<2x8x16xbf16, #tpu.memory_space<vmem>>, vector<1x8x16xbf16>
      %145 = vector.shape_cast %144 : vector<1x8x16xbf16> to vector<8x16xbf16>
      %cst_69 = arith.constant dense<0.000000e+00> : vector<8x16xf32>
      %146 = tpu.matmul %142, %145, %cst_69 {dimension_numbers = #tpu.dot_dimension_numbers<[1], [0], [0], [1], [0, 0, 1, 1], [], []>} : vector<8x8xbf16>, vector<8x16xbf16>, vector<8x16xf32> -> vector<8x16xf32>
      %147 = arith.addf %141, %146 : vector<8x16xf32>
      %148 = arith.index_cast %arg30 : i32 to index
      %c0_70 = arith.constant 0 : index
      %c0_71 = arith.constant 0 : index
      %149 = vector.load %arg28[%148, %c0_70, %c0_71] : memref<2x8x16xf32, #tpu.memory_space<vmem>>, vector<1x8x16xf32>
      %150 = vector.shape_cast %149 : vector<1x8x16xf32> to vector<8x16xf32>
      %151 = vector.shape_cast %147 : vector<8x16xf32> to vector<1x8x16xf32>
      tpu.vector_store %arg28[%148, %c0_70, %c0_71], %151 {strides = array<i32>} : memref<2x8x16xf32, #tpu.memory_space<vmem>>, vector<1x8x16xf32>,
      %152 = arith.index_cast %arg30 : i32 to index
      %c0_72 = arith.constant 0 : index
      %c0_73 = arith.constant 0 : index
      %153 = vector.load %arg26[%152, %c0_72, %c0_73] : memref<2x8x1xf32, #tpu.memory_space<vmem>>, vector<1x8x1xf32>
      %154 = vector.shape_cast %153 : vector<1x8x1xf32> to vector<8x1xf32>
      %155 = vector.shape_cast %120 : vector<8x1xf32> to vector<1x8x1xf32>
      tpu.vector_store %arg26[%152, %c0_72, %c0_73], %155 {strides = array<i32>} : memref<2x8x1xf32, #tpu.memory_space<vmem>>, vector<1x8x1xf32>,
    }
    %c2_i32_48 = arith.constant 2 : i32
    %c1_i32_49 = arith.constant 1 : i32
    %103 = arith.cmpi eq, %arg2, %c1_i32_49 : i32
    %104 = arith.extui %103 : i1 to i32
    %c0_i32_50 = arith.constant 0 : i32
    %105 = arith.cmpi ne, %104, %c0_i32_50 : i32
    scf.if %105 {
      %c0_51 = arith.constant 0 : index
      %c0_52 = arith.constant 0 : index
      %c0_53 = arith.constant 0 : index
      %106 = vector.load %arg27[%c0_51, %c0_52, %c0_53] : memref<2x8x1xf32, #tpu.memory_space<vmem>>, vector<1x8x1xf32>
      %107 = vector.shape_cast %106 : vector<1x8x1xf32> to vector<8x1xf32>
      %108 = tpu.reciprocal %107 {approx = true} : vector<8x1xf32> -> vector<8x1xf32>
      %c0_54 = arith.constant 0 : index
      %c0_55 = arith.constant 0 : index
      %c0_56 = arith.constant 0 : index
      %109 = vector.load %arg28[%c0_54, %c0_55, %c0_56] : memref<2x8x16xf32, #tpu.memory_space<vmem>>, vector<1x8x16xf32>
      %110 = vector.shape_cast %109 : vector<1x8x16xf32> to vector<8x16xf32>
      %111 = vector.broadcast %108 : vector<8x1xf32> to vector<8x16xf32>
      %112 = arith.mulf %110, %111 : vector<8x16xf32>
      %113 = arith.truncf %112 : vector<8x16xf32> to vector<8x16xbf16>
      %c0_57 = arith.constant 0 : index
      %c0_58 = arith.constant 0 : index
      %114 = vector.load %arg29[%c0_57, %c0_58] : memref<8x32xbf16, #tpu.memory_space<vmem>>, vector<8x16xbf16>
      tpu.vector_store %arg29[%c0_57, %c0_58], %113 {strides = array<i32>} : memref<8x32xbf16, #tpu.memory_space<vmem>>, vector<8x16xbf16>,
      %c1_59 = arith.constant 1 : index
      %c0_60 = arith.constant 0 : index
      %c0_61 = arith.constant 0 : index
      %115 = vector.load %arg27[%c1_59, %c0_60, %c0_61] : memref<2x8x1xf32, #tpu.memory_space<vmem>>, vector<1x8x1xf32>
      %116 = vector.shape_cast %115 : vector<1x8x1xf32> to vector<8x1xf32>
      %117 = tpu.reciprocal %116 {approx = true} : vector<8x1xf32> -> vector<8x1xf32>
      %c1_62 = arith.constant 1 : index
      %c0_63 = arith.constant 0 : index
      %c0_64 = arith.constant 0 : index
      %118 = vector.load %arg28[%c1_62, %c0_63, %c0_64] : memref<2x8x16xf32, #tpu.memory_space<vmem>>, vector<1x8x16xf32>
      %119 = vector.shape_cast %118 : vector<1x8x16xf32> to vector<8x16xf32>
      %120 = vector.broadcast %117 : vector<8x1xf32> to vector<8x16xf32>
      %121 = arith.mulf %119, %120 : vector<8x16xf32>
      %122 = arith.truncf %121 : vector<8x16xf32> to vector<8x16xbf16>
      %c0_65 = arith.constant 0 : index
      %c16 = arith.constant 16 : index
      %123 = vector.load %arg29[%c0_65, %c16] : memref<8x32xbf16, #tpu.memory_space<vmem>>, vector<8x16xbf16>
      tpu.vector_store %arg29[%c0_65, %c16], %122 {strides = array<i32>} : memref<8x32xbf16, #tpu.memory_space<vmem>>, vector<8x16xbf16>,
      %c0_66 = arith.constant 0 : index
      %c0_67 = arith.constant 0 : index
      %124 = vector.load %arg29[%c0_66, %c0_67] : memref<8x32xbf16, #tpu.memory_space<vmem>>, vector<8x32xbf16>
      %c0_68 = arith.constant 0 : index
      %c0_69 = arith.constant 0 : index
      %125 = vector.load %arg20[%c0_68, %c0_69] : memref<32x32xbf16, #tpu.memory_space<vmem>>, vector<32x32xbf16>
      %cst_70 = arith.constant dense<0.000000e+00> : vector<8x32xf32>
      %126 = tpu.matmul %124, %125, %cst_70 {dimension_numbers = #tpu.dot_dimension_numbers<[1], [0], [0], [1], [0, 0, 1, 1], [], []>} : vector<8x32xbf16>, vector<32x32xbf16>, vector<8x32xf32> -> vector<8x32xf32>
      %c0_71 = arith.constant 0 : index
      %c0_72 = arith.constant 0 : index
      %127 = vector.load %arg21[%c0_71, %c0_72] : memref<1x32xf32, #tpu.memory_space<vmem>>, vector<1x32xf32>
      %128 = vector.broadcast %127 : vector<1x32xf32> to vector<8x32xf32>
      %129 = arith.addf %126, %128 : vector<8x32xf32>
      %c0_73 = arith.constant 0 : index
      %c0_74 = arith.constant 0 : index
      %c0_75 = arith.constant 0 : index
      %130 = vector.load %arg3[%c0_73, %c0_74, %c0_75] : memref<1x8x32xf32, #tpu.memory_space<vmem>>, vector<1x8x32xf32>
      %131 = vector.shape_cast %130 : vector<1x8x32xf32> to vector<8x32xf32>
      %c0_76 = arith.constant 0 : index
      %c0_77 = arith.constant 0 : index
      %c0_78 = arith.constant 0 : index
      %132 = vector.load %arg7[%c0_76, %c0_77, %c0_78] : memref<1x1x32xf32, #tpu.memory_space<vmem>>, vector<1x1x32xf32>
      %133 = vector.shape_cast %132 : vector<1x1x32xf32> to vector<1x32xf32>
      %134 = vector.broadcast %133 : vector<1x32xf32> to vector<8x32xf32>
      %135 = arith.mulf %129, %134 : vector<8x32xf32>
      %136 = arith.addf %131, %135 : vector<8x32xf32>
      %c0_79 = arith.constant 0 : index
      %c0_80 = arith.constant 0 : index
      %c0_81 = arith.constant 0 : index
      %137 = vector.load %arg22[%c0_79, %c0_80, %c0_81] : memref<1x8x32xf32, #tpu.memory_space<vmem>>, vector<1x8x32xf32>
      %138 = vector.shape_cast %137 : vector<1x8x32xf32> to vector<8x32xf32>
      %139 = vector.shape_cast %136 : vector<8x32xf32> to vector<1x8x32xf32>
      tpu.vector_store %arg22[%c0_79, %c0_80, %c0_81], %139 {strides = array<i32>} : memref<1x8x32xf32, #tpu.memory_space<vmem>>, vector<1x8x32xf32>,
    } else {
    }
    return
  }
  func.func @transform_0(%arg0: i32, %arg1: i32, %arg2: i32) -> (i32, i32, i32) {
    %c0_i32 = arith.constant 0 : i32
    %c0_i32_0 = arith.constant 0 : i32
    return %arg0, %arg1, %c0_i32 : i32, i32, i32
  }
  func.func @transform_1(%arg0: i32, %arg1: i32, %arg2: i32) -> (i32, i32, i32) {
    %c0_i32 = arith.constant 0 : i32
    %c0_i32_0 = arith.constant 0 : i32
    return %arg0, %arg2, %c0_i32 : i32, i32, i32
  }
  func.func @transform_2(%arg0: i32, %arg1: i32, %arg2: i32) -> (i32, i32, i32) {
    %c0_i32 = arith.constant 0 : i32
    %c0_i32_0 = arith.constant 0 : i32
    %c0_i32_1 = arith.constant 0 : i32
    return %arg0, %c0_i32, %c0_i32_0 : i32, i32, i32
  }
  func.func @transform_3(%arg0: i32, %arg1: i32, %arg2: i32) -> (i32, i32, i32) {
    %c0_i32 = arith.constant 0 : i32
    %c0_i32_0 = arith.constant 0 : i32
    %c0_i32_1 = arith.constant 0 : i32
    return %arg0, %c0_i32, %c0_i32_0 : i32, i32, i32
  }
  func.func @transform_4(%arg0: i32, %arg1: i32, %arg2: i32) -> (i32, i32, i32) {
    %c0_i32 = arith.constant 0 : i32
    %c0_i32_0 = arith.constant 0 : i32
    %c0_i32_1 = arith.constant 0 : i32
    return %arg0, %c0_i32, %c0_i32_0 : i32, i32, i32
  }
  func.func @transform_5(%arg0: i32, %arg1: i32, %arg2: i32) -> (i32, i32) {
    %c0_i32 = arith.constant 0 : i32
    %c0_i32_0 = arith.constant 0 : i32
    return %arg1, %c0_i32 : i32, i32
  }
  func.func @transform_6(%arg0: i32, %arg1: i32, %arg2: i32) -> (i32, i32) {
    %c0_i32 = arith.constant 0 : i32
    %c0_i32_0 = arith.constant 0 : i32
    return %arg1, %c0_i32 : i32, i32
  }
  func.func @transform_7(%arg0: i32, %arg1: i32, %arg2: i32) -> (i32, i32) {
    %c0_i32 = arith.constant 0 : i32
    %c0_i32_0 = arith.constant 0 : i32
    return %arg1, %c0_i32 : i32, i32
  }
  func.func @transform_8(%arg0: i32, %arg1: i32, %arg2: i32) -> (i32, i32) {
    %c0_i32 = arith.constant 0 : i32
    %c0_i32_0 = arith.constant 0 : i32
    return %arg2, %c0_i32 : i32, i32
  }
  func.func @transform_9(%arg0: i32, %arg1: i32, %arg2: i32) -> (i32, i32) {
    %c0_i32 = arith.constant 0 : i32
    %c0_i32_0 = arith.constant 0 : i32
    return %arg2, %c0_i32 : i32, i32
  }
  func.func @transform_10(%arg0: i32, %arg1: i32, %arg2: i32) -> (i32, i32) {
    %c0_i32 = arith.constant 0 : i32
    %c0_i32_0 = arith.constant 0 : i32
    return %arg2, %c0_i32 : i32, i32
  }
  func.func @transform_11(%arg0: i32, %arg1: i32, %arg2: i32) -> (i32, i32) {
    %c0_i32 = arith.constant 0 : i32
    %c0_i32_0 = arith.constant 0 : i32
    %c0_i32_1 = arith.constant 0 : i32
    return %c0_i32, %c0_i32_0 : i32, i32
  }
  func.func @transform_12(%arg0: i32, %arg1: i32, %arg2: i32) -> (i32, i32) {
    %c0_i32 = arith.constant 0 : i32
    %c0_i32_0 = arith.constant 0 : i32
    %c0_i32_1 = arith.constant 0 : i32
    return %c0_i32, %c0_i32_0 : i32, i32
  }
  func.func @transform_13(%arg0: i32, %arg1: i32, %arg2: i32) -> (i32, i32) {
    %c0_i32 = arith.constant 0 : i32
    %c0_i32_0 = arith.constant 0 : i32
    %c0_i32_1 = arith.constant 0 : i32
    return %c0_i32, %c0_i32_0 : i32, i32
  }
  func.func @transform_14(%arg0: i32, %arg1: i32, %arg2: i32) -> (i32, i32) {
    %c0_i32 = arith.constant 0 : i32
    %c0_i32_0 = arith.constant 0 : i32
    %c0_i32_1 = arith.constant 0 : i32
    return %c0_i32, %c0_i32_0 : i32, i32
  }
  func.func @transform_15(%arg0: i32, %arg1: i32, %arg2: i32) -> (i32, i32) {
    %c0_i32 = arith.constant 0 : i32
    %c0_i32_0 = arith.constant 0 : i32
    %c0_i32_1 = arith.constant 0 : i32
    return %c0_i32, %c0_i32_0 : i32, i32
  }
  func.func @transform_16(%arg0: i32, %arg1: i32, %arg2: i32) -> (i32, i32) {
    %c0_i32 = arith.constant 0 : i32
    %c0_i32_0 = arith.constant 0 : i32
    %c0_i32_1 = arith.constant 0 : i32
    return %c0_i32, %c0_i32_0 : i32, i32
  }
  func.func @transform_17(%arg0: i32, %arg1: i32, %arg2: i32) -> (i32, i32) {
    %c0_i32 = arith.constant 0 : i32
    %c0_i32_0 = arith.constant 0 : i32
    %c0_i32_1 = arith.constant 0 : i32
    return %c0_i32, %c0_i32_0 : i32, i32
  }
  func.func @transform_18(%arg0: i32, %arg1: i32, %arg2: i32) -> (i32, i32) {
    %c0_i32 = arith.constant 0 : i32
    %c0_i32_0 = arith.constant 0 : i32
    %c0_i32_1 = arith.constant 0 : i32
    return %c0_i32, %c0_i32_0 : i32, i32
  }
  func.func @transform_19(%arg0: i32, %arg1: i32, %arg2: i32) -> (i32, i32, i32) {
    %c0_i32 = arith.constant 0 : i32
    %c0_i32_0 = arith.constant 0 : i32
    return %arg0, %arg1, %c0_i32 : i32, i32, i32
  }
}

</mosaic_0001>

<llo_original>
// kernel: tpu_custom_call.1
$region0: #{tpu_custom_call.1}
  #allocation0 [shape = 'u32[]', space=smem, size = 0x4, offset = 0x4, fixed_abs, tag = 'smem constant byte address 0x4 - core index']
  #allocation1 [shape = 'u32[144,128]{1,0:T(1,128)}', space=vmem, size = 0x12000, scoped, tag = 'internal scratch']
  #allocation2 [shape = 'bf16[2,8,16]{2,1,0:T(8,128)(2,1)}', space=vmem, size = 0x1000, scoped, tag = 'scratch operand']
  #allocation3 [shape = 'bf16[2,8,16]{2,1,0:T(8,128)(2,1)}', space=vmem, size = 0x1000, scoped, tag = 'scratch operand']
  #allocation4 [shape = 'bf16[2,8,16]{2,1,0:T(8,128)(2,1)}', space=vmem, size = 0x1000, scoped, tag = 'scratch operand']
  #allocation5 [shape = 'f32[2,8,1]{2,1,0:T(8,128)}', space=vmem, size = 0x2000, scoped, tag = 'scratch operand']
  #allocation6 [shape = 'f32[2,8,1]{2,1,0:T(8,128)}', space=vmem, size = 0x2000, scoped, tag = 'scratch operand']
  #allocation7 [shape = 'f32[2,8,16]{2,1,0:T(8,128)}', space=vmem, size = 0x2000, scoped, tag = 'scratch operand']
  #allocation8 [shape = 'bf16[8,32]{1,0:T(8,128)(2,1)}', space=vmem, size = 0x800, scoped, tag = 'scratch operand']
  %s0 = inlined_call_operand.hbm [shape: f32[2,16,32], index: 0, kind: input, shape index: {}]
  %s1 = inlined_call_operand.hbm [shape: f32[2,16,32], index: 1, kind: input, shape index: {}]
  %s2 = inlined_call_operand.hbm [shape: f32[2,1,32], index: 2, kind: input, shape index: {}]
  %s3 = inlined_call_operand.hbm [shape: f32[2,1,32], index: 3, kind: input, shape index: {}]
  %s4 = inlined_call_operand.hbm [shape: f32[2,1,32], index: 4, kind: input, shape index: {}]
  %s5 = inlined_call_operand.vmem [shape: f32[16,16], index: 5, kind: input, shape index: {}]
  %s6 = inlined_call_operand.hbm [shape: f32[16,16], index: 6, kind: input, shape index: {}]
  %s7 = inlined_call_operand.hbm [shape: f32[16,16], index: 7, kind: input, shape index: {}]
  %s8 = inlined_call_operand.hbm [shape: f32[16,16], index: 8, kind: input, shape index: {}]
  %s9 = inlined_call_operand.vmem [shape: f32[16,16], index: 9, kind: input, shape index: {}]
  %s10 = inlined_call_operand.hbm [shape: f32[16,16], index: 10, kind: input, shape index: {}]
  %s11 = inlined_call_operand.hbm [shape: bf16[32,32], index: 11, kind: input, shape index: {}]
  %s12 = inlined_call_operand.hbm [shape: f32[1,32], index: 12, kind: input, shape index: {}]
  %s13 = inlined_call_operand.vmem [shape: bf16[32,64], index: 13, kind: input, shape index: {}]
  %s14 = inlined_call_operand.hbm [shape: f32[1,64], index: 14, kind: input, shape index: {}]
  %s15 = inlined_call_operand.hbm [shape: f32[1,32], index: 15, kind: input, shape index: {}]
  %s16 = inlined_call_operand.hbm [shape: f32[1,32], index: 16, kind: input, shape index: {}]
  %s17 = inlined_call_operand.vmem [shape: bf16[32,32], index: 17, kind: input, shape index: {}]
  %s18 = inlined_call_operand.vmem [shape: f32[1,32], index: 18, kind: input, shape index: {}]
  %s19 = inlined_call_operand.hbm [shape: f32[2,16,32], index: 19, kind: output, shape index: {}]
  %s20 = sld [smem:[#allocation0]]
  $region180: #{tpu_custom_call.1} parent=0
    _
  %s22 = ssub.s32 1, %s20
  %s23 = scalar_select 0, %s22, %s20
  $region1: #{tpu_custom_call.1} parent=0
    #allocation9 [shape = 'u8[8192]{0}', space=vmem, size = 0x2000, scoped, tag = 'input window, operand 0']
    #allocation10 [shape = 's32[2]{0}', space=sflag, size = 0x8, scoped, tag = 'scoped memory for tpu_custom_call.1']
    #allocation11 [shape = 's32[2]{0}', space=sflag, size = 0x8, scoped, tag = 'scoped memory for tpu_custom_call.1']
    #allocation12 [shape = 'u8[8192]{0}', space=vmem, size = 0x2000, scoped, tag = 'input window, operand 1']
    #allocation13 [shape = 's32[2]{0}', space=sflag, size = 0x8, scoped, tag = 'scoped memory for tpu_custom_call.1']
    #allocation14 [shape = 'u8[1024]{0}', space=vmem, size = 0x400, scoped, tag = 'input window, operand 2']
    #allocation15 [shape = 'u8[1024]{0}', space=vmem, size = 0x400, scoped, tag = 'input window, operand 3']
    #allocation16 [shape = 's32[2]{0}', space=sflag, size = 0x8, scoped, tag = 'scoped memory for tpu_custom_call.1']
    #allocation17 [shape = 'u8[1024]{0}', space=vmem, size = 0x400, scoped, tag = 'input window, operand 4']
    #allocation18 [shape = 'u8[8192]{0}', space=vmem, size = 0x2000, scoped, tag = 'input window, operand 6']
    #allocation19 [shape = 's32[2]{0}', space=sflag, size = 0x8, scoped, tag = 'scoped memory for tpu_custom_call.1']
    #allocation20 [shape = 'u8[8192]{0}', space=vmem, size = 0x2000, scoped, tag = 'input window, operand 7']
    #allocation21 [shape = 'u8[8192]{0}', space=vmem, size = 0x2000, scoped, tag = 'input window, operand 8']
    #allocation22 [shape = 's32[2]{0}', space=sflag, size = 0x8, scoped, tag = 'scoped memory for tpu_custom_call.1']
    #allocation23 [shape = 'u8[8192]{0}', space=vmem, size = 0x2000, scoped, tag = 'input window, operand 10']
    #allocation24 [shape = 'u8[8192]{0}', space=vmem, size = 0x2000, scoped, tag = 'input window, operand 11, single buffered']
    #allocation25 [shape = 's32[1]{0}', space=sflag, size = 0x4, scoped, tag = 'scoped memory for tpu_custom_call.1']
    #allocation26 [shape = 'u8[512]{0}', space=vmem, size = 0x400, scoped, tag = 'input window, operand 12, single buffered']
    #allocation27 [shape = 'u8[512]{0}', space=vmem, size = 0x400, scoped, tag = 'input window, operand 14, single buffered']
    #allocation28 [shape = 's32[1]{0}', space=sflag, size = 0x4, scoped, tag = 'scoped memory for tpu_custom_call.1']
    #allocation29 [shape = 'u8[512]{0}', space=vmem, size = 0x400, scoped, tag = 'input window, operand 15, single buffered']
    #allocation30 [shape = 'u8[512]{0}', space=vmem, size = 0x400, scoped, tag = 'input window, operand 16, single buffered']
    #allocation31 [shape = 's32[1]{0}', space=sflag, size = 0x4, scoped, tag = 'scoped memory for tpu_custom_call.1']
    #allocation32 [shape = 'u8[8192]{0}', space=vmem, size = 0x2000, scoped, tag = 'output window, operand 0']
    %24 = vsyncpa [#allocation10], 0
    %s25 = scalar_lea.sflag [#allocation10], 1
    %26 = vsyncpa %s25, 0
    %27 = vsyncpa [#allocation13], 0
    %s28 = scalar_lea.sflag [#allocation13], 1
    %29 = vsyncpa %s28, 0
    %30 = vsyncpa [#allocation16], 0
    %s31 = scalar_lea.sflag [#allocation16], 1
    %32 = vsyncpa %s31, 0
    %33 = vsyncpa [#allocation19], 0
    %s34 = scalar_lea.sflag [#allocation19], 1
    %35 = vsyncpa %s34, 0
    %36 = vsyncpa [#allocation22], 0
    %s37 = scalar_lea.sflag [#allocation22], 1
    %38 = vsyncpa %s37, 0
    %39 = vsyncpa [#allocation25], 0
    %40 = vsyncpa [#allocation28], 0
    %41 = vsyncpa [#allocation31], 0
    %42 = vsyncpa [#allocation11], 0
    %s43 = scalar_lea.sflag [#allocation11], 1
    %44 = vsyncpa %s43, 0
    loop: start=0, step=1, limit=10
    $region2: #{tpu_custom_call.1} parent=1 // loop_pre_header
      _
    $region3: #{tpu_custom_call.1} parent=1 // loop_header
      %s46 = sphi 0, %s50
      %p47 = scmp.ge.s32.totalorder %s46, 10
      %s53 = sphi 0, %s72
      %s54 = sphi 0, %s68
      %s55 = sphi 0, %s64
      %s56 = sphi 0, %s53
      %s57 = sphi 0, %s54
      %s58 = sphi 0, %s55
      %s59 = sphi 0, %s56
      %s60 = sphi 0, %s57
      %s61 = sphi 0, %s58
      %s77 = sphi 0, %s79
      %s80 = sphi 0, %s77
      %s81 = sphi 0, %s80
      %s97 = sphi 0, %s81
      %s105 = sphi 0, %s107
      %s108 = sphi 0, %s105
      %s109 = sphi 0, %s108
      %s125 = sphi 0, %s109
      %s131 = sphi 0, %s133
      %s134 = sphi 0, %s131
      %s135 = sphi 0, %s134
      %s151 = sphi 0, %s135
      %s157 = sphi 0, %s159
      %s160 = sphi 0, %s157
      %s161 = sphi 0, %s160
      %s177 = sphi 0, %s161
      %s183 = sphi 0, %s185
      %s186 = sphi 0, %s183
      %s187 = sphi 0, %s186
      %s203 = sphi 0, %s187
      %s209 = sphi 0, %s211
      %s212 = sphi 0, %s209
      %s213 = sphi 0, %s212
      %s229 = sphi 0, %s213
      %s235 = sphi 0, %s237
      %s238 = sphi 0, %s235
      %s239 = sphi 0, %s238
      %s255 = sphi 0, %s239
      %s261 = sphi 0, %s263
      %s264 = sphi 0, %s261
      %s265 = sphi 0, %s264
      %s281 = sphi 0, %s265
      %s287 = sphi 0, %s289
      %s290 = sphi 0, %s287
      %s291 = sphi 0, %s290
      %s307 = sphi 0, %s291
      %s313 = sphi 0, %s315
      %s316 = sphi 0, %s313
      %s317 = sphi 0, %s316
      %s333 = sphi 0, %s317
      %s339 = sphi 0, %s341
      %s342 = sphi 0, %s339
      %s343 = sphi 0, %s342
      %s359 = sphi 0, %s343
      %s363 = sphi 0, %s363
      %s365 = sphi 0, %s363
      %s366 = sphi 0, %s365
      %s380 = sphi 0, %s366
      %s384 = sphi 0, %s384
      %s386 = sphi 0, %s384
      %s387 = sphi 0, %s386
      %s401 = sphi 0, %s387
      %s405 = sphi 0, %s405
      %s407 = sphi 0, %s405
      %s408 = sphi 0, %s407
      %s422 = sphi 0, %s408
      %s426 = sphi 0, %s426
      %s428 = sphi 0, %s426
      %s429 = sphi 0, %s428
      %s443 = sphi 0, %s429
      %s447 = sphi 0, %s447
      %s449 = sphi 0, %s447
      %s450 = sphi 0, %s449
      %s464 = sphi 0, %s450
      %s468 = sphi 0, %s468
      %s470 = sphi 0, %s468
      %s471 = sphi 0, %s470
      %s485 = sphi 0, %s471
      %s489 = sphi 0, %s489
      %s491 = sphi 0, %s489
      %s492 = sphi 0, %s491
      %s506 = sphi 0, %s492
      %s510 = sphi 0, %s510
      %s512 = sphi 0, %s510
      %s513 = sphi 0, %s512
      %s527 = sphi 0, %s513
      %s535 = sphi 0, %s537
      %s538 = sphi 0, %s535
      %s539 = sphi 0, %s538
      %s555 = sphi 0, %s539
    $region4: #{tpu_custom_call.1} parent=1 // loop_header_branch
      %49 = sbr.rel (%p47) target = $region8
    $region5: #{tpu_custom_call.1} parent=1 // loop_body
      %s51 = ssub.s32 %s46, 1
      %s52 = ssub.s32 %s46, 2
      %s62 = sadd.s32 1, %s55
      %p63 = scmp.ge.s32.totalorder %s62, 2
      %s64 = scalar_select %p63, 0, %s62
      %s65 = sadd.s32 1, %s54
      %s66 = scalar_select %p63, %s65, %s54
      %p67 = scmp.ge.s32.totalorder %s66, 2
      %s68 = scalar_select %p67, 0, %s66
      %s69 = sadd.s32 1, %s53
      %s70 = scalar_select %p67, %s69, %s53
      %p71 = scmp.ge.s32.totalorder %s70, 2
      %s72 = scalar_select %p71, 0, %s70
      %s73 = ssub.s32 %s53, %s72
      %s74 = ssub.s32 %s54, %s68
      %s75 = sor.u32 %s73, %s74
      %p76 = scmp.eq.s32.totalorder %s75, 0
      %s78 = sadd.s32 %s77, 1
      %s79 = scalar_select %p76, %s77, %s78
      %p82 = pneg %p76
      %p83 = scmp.eq.s32.totalorder %s46, 7
      %p84 = por %p82, %p83
      %p85 = scmp.ne.s32.totalorder %s77, %s80
      %p86 = scmp.eq.s32.totalorder %s46, 0
      %p87 = por %p85, %p86
      %p88 = scmp.ne.s32.totalorder %s77, %s80
      %p89 = scmp.eq.s32.totalorder %s51, 7
      %p90 = por %p88, %p89
      %p91 = scmp.ne.s32.totalorder %s80, %s81
      %p92 = scmp.eq.s32.totalorder %s51, 0
      %p93 = por %p91, %p92
      %p94 = scmp.ne.s32.totalorder %s80, %s81
      %p95 = scmp.eq.s32.totalorder %s52, 7
      %p96 = por %p94, %p95
      %p98 = scmp.ne.s32.totalorder %s81, %s97
      %p99 = scmp.eq.s32.totalorder %s52, 0
      %p100 = por %p98, %p99
      %s101 = ssub.s32 %s53, %s72
      %s102 = ssub.s32 %s55, %s64
      %s103 = sor.u32 %s101, %s102
      %p104 = scmp.eq.s32.totalorder %s103, 0
      %s106 = sadd.s32 %s105, 1
      %s107 = scalar_select %p104, %s105, %s106
      %p110 = pneg %p104
      %p111 = scmp.eq.s32.totalorder %s46, 7
      %p112 = por %p110, %p111
      %p113 = scmp.ne.s32.totalorder %s105, %s108
      %p114 = scmp.eq.s32.totalorder %s46, 0
      %p115 = por %p113, %p114
      %p116 = scmp.ne.s32.totalorder %s105, %s108
      %p117 = scmp.eq.s32.totalorder %s51, 7
      %p118 = por %p116, %p117
      %p119 = scmp.ne.s32.totalorder %s108, %s109
      %p120 = scmp.eq.s32.totalorder %s51, 0
      %p121 = por %p119, %p120
      %p122 = scmp.ne.s32.totalorder %s108, %s109
      %p123 = scmp.eq.s32.totalorder %s52, 7
      %p124 = por %p122, %p123
      %p126 = scmp.ne.s32.totalorder %s109, %s125
      %p127 = scmp.eq.s32.totalorder %s52, 0
      %p128 = por %p126, %p127
      %s129 = ssub.s32 %s53, %s72
      %p130 = scmp.eq.s32.totalorder %s129, 0
      %s132 = sadd.s32 %s131, 1
      %s133 = scalar_select %p130, %s131, %s132
      %p136 = pneg %p130
      %p137 = scmp.eq.s32.totalorder %s46, 7
      %p138 = por %p136, %p137
      %p139 = scmp.ne.s32.totalorder %s131, %s134
      %p140 = scmp.eq.s32.totalorder %s46, 0
      %p141 = por %p139, %p140
      %p142 = scmp.ne.s32.totalorder %s131, %s134
      %p143 = scmp.eq.s32.totalorder %s51, 7
      %p144 = por %p142, %p143
      %p145 = scmp.ne.s32.totalorder %s134, %s135
      %p146 = scmp.eq.s32.totalorder %s51, 0
      %p147 = por %p145, %p146
      %p148 = scmp.ne.s32.totalorder %s134, %s135
      %p149 = scmp.eq.s32.totalorder %s52, 7
      %p150 = por %p148, %p149
      %p152 = scmp.ne.s32.totalorder %s135, %s151
      %p153 = scmp.eq.s32.totalorder %s52, 0
      %p154 = por %p152, %p153
      %s155 = ssub.s32 %s53, %s72
      %p156 = scmp.eq.s32.totalorder %s155, 0
      %s158 = sadd.s32 %s157, 1
      %s159 = scalar_select %p156, %s157, %s158
      %p162 = pneg %p156
      %p163 = scmp.eq.s32.totalorder %s46, 7
      %p164 = por %p162, %p163
      %p165 = scmp.ne.s32.totalorder %s157, %s160
      %p166 = scmp.eq.s32.totalorder %s46, 0
      %p167 = por %p165, %p166
      %p168 = scmp.ne.s32.totalorder %s157, %s160
      %p169 = scmp.eq.s32.totalorder %s51, 7
      %p170 = por %p168, %p169
      %p171 = scmp.ne.s32.totalorder %s160, %s161
      %p172 = scmp.eq.s32.totalorder %s51, 0
      %p173 = por %p171, %p172
      %p174 = scmp.ne.s32.totalorder %s160, %s161
      %p175 = scmp.eq.s32.totalorder %s52, 7
      %p176 = por %p174, %p175
      %p178 = scmp.ne.s32.totalorder %s161, %s177
      %p179 = scmp.eq.s32.totalorder %s52, 0
      %p180 = por %p178, %p179
      %s181 = ssub.s32 %s53, %s72
      %p182 = scmp.eq.s32.totalorder %s181, 0
      %s184 = sadd.s32 %s183, 1
      %s185 = scalar_select %p182, %s183, %s184
      %p188 = pneg %p182
      %p189 = scmp.eq.s32.totalorder %s46, 7
      %p190 = por %p188, %p189
      %p191 = scmp.ne.s32.totalorder %s183, %s186
      %p192 = scmp.eq.s32.totalorder %s46, 0
      %p193 = por %p191, %p192
      %p194 = scmp.ne.s32.totalorder %s183, %s186
      %p195 = scmp.eq.s32.totalorder %s51, 7
      %p196 = por %p194, %p195
      %p197 = scmp.ne.s32.totalorder %s186, %s187
      %p198 = scmp.eq.s32.totalorder %s51, 0
      %p199 = por %p197, %p198
      %p200 = scmp.ne.s32.totalorder %s186, %s187
      %p201 = scmp.eq.s32.totalorder %s52, 7
      %p202 = por %p200, %p201
      %p204 = scmp.ne.s32.totalorder %s187, %s203
      %p205 = scmp.eq.s32.totalorder %s52, 0
      %p206 = por %p204, %p205
      %s207 = ssub.s32 %s54, %s68
      %p208 = scmp.eq.s32.totalorder %s207, 0
      %s210 = sadd.s32 %s209, 1
      %s211 = scalar_select %p208, %s209, %s210
      %p214 = pneg %p208
      %p215 = scmp.eq.s32.totalorder %s46, 7
      %p216 = por %p214, %p215
      %p217 = scmp.ne.s32.totalorder %s209, %s212
      %p218 = scmp.eq.s32.totalorder %s46, 0
      %p219 = por %p217, %p218
      %p220 = scmp.ne.s32.totalorder %s209, %s212
      %p221 = scmp.eq.s32.totalorder %s51, 7
      %p222 = por %p220, %p221
      %p223 = scmp.ne.s32.totalorder %s212, %s213
      %p224 = scmp.eq.s32.totalorder %s51, 0
      %p225 = por %p223, %p224
      %p226 = scmp.ne.s32.totalorder %s212, %s213
      %p227 = scmp.eq.s32.totalorder %s52, 7
      %p228 = por %p226, %p227
      %p230 = scmp.ne.s32.totalorder %s213, %s229
      %p231 = scmp.eq.s32.totalorder %s52, 0
      %p232 = por %p230, %p231
      %s233 = ssub.s32 %s54, %s68
      %p234 = scmp.eq.s32.totalorder %s233, 0
      %s236 = sadd.s32 %s235, 1
      %s237 = scalar_select %p234, %s235, %s236
      %p240 = pneg %p234
      %p241 = scmp.eq.s32.totalorder %s46, 7
      %p242 = por %p240, %p241
      %p243 = scmp.ne.s32.totalorder %s235, %s238
      %p244 = scmp.eq.s32.totalorder %s46, 0
      %p245 = por %p243, %p244
      %p246 = scmp.ne.s32.totalorder %s235, %s238
      %p247 = scmp.eq.s32.totalorder %s51, 7
      %p248 = por %p246, %p247
      %p249 = scmp.ne.s32.totalorder %s238, %s239
      %p250 = scmp.eq.s32.totalorder %s51, 0
      %p251 = por %p249, %p250
      %p252 = scmp.ne.s32.totalorder %s238, %s239
      %p253 = scmp.eq.s32.totalorder %s52, 7
      %p254 = por %p252, %p253
      %p256 = scmp.ne.s32.totalorder %s239, %s255
      %p257 = scmp.eq.s32.totalorder %s52, 0
      %p258 = por %p256, %p257
      %s259 = ssub.s32 %s54, %s68
      %p260 = scmp.eq.s32.totalorder %s259, 0
      %s262 = sadd.s32 %s261, 1
      %s263 = scalar_select %p260, %s261, %s262
      %p266 = pneg %p260
      %p267 = scmp.eq.s32.totalorder %s46, 7
      %p268 = por %p266, %p267
      %p269 = scmp.ne.s32.totalorder %s261, %s264
      %p270 = scmp.eq.s32.totalorder %s46, 0
      %p271 = por %p269, %p270
      %p272 = scmp.ne.s32.totalorder %s261, %s264
      %p273 = scmp.eq.s32.totalorder %s51, 7
      %p274 = por %p272, %p273
      %p275 = scmp.ne.s32.totalorder %s264, %s265
      %p276 = scmp.eq.s32.totalorder %s51, 0
      %p277 = por %p275, %p276
      %p278 = scmp.ne.s32.totalorder %s264, %s265
      %p279 = scmp.eq.s32.totalorder %s52, 7
      %p280 = por %p278, %p279
      %p282 = scmp.ne.s32.totalorder %s265, %s281
      %p283 = scmp.eq.s32.totalorder %s52, 0
      %p284 = por %p282, %p283
      %s285 = ssub.s32 %s55, %s64
      %p286 = scmp.eq.s32.totalorder %s285, 0
      %s288 = sadd.s32 %s287, 1
      %s289 = scalar_select %p286, %s287, %s288
      %p292 = pneg %p286
      %p293 = scmp.eq.s32.totalorder %s46, 7
      %p294 = por %p292, %p293
      %p295 = scmp.ne.s32.totalorder %s287, %s290
      %p296 = scmp.eq.s32.totalorder %s46, 0
      %p297 = por %p295, %p296
      %p298 = scmp.ne.s32.totalorder %s287, %s290
      %p299 = scmp.eq.s32.totalorder %s51, 7
      %p300 = por %p298, %p299
      %p301 = scmp.ne.s32.totalorder %s290, %s291
      %p302 = scmp.eq.s32.totalorder %s51, 0
      %p303 = por %p301, %p302
      %p304 = scmp.ne.s32.totalorder %s290, %s291
      %p305 = scmp.eq.s32.totalorder %s52, 7
      %p306 = por %p304, %p305
      %p308 = scmp.ne.s32.totalorder %s291, %s307
      %p309 = scmp.eq.s32.totalorder %s52, 0
      %p310 = por %p308, %p309
      %s311 = ssub.s32 %s55, %s64
      %p312 = scmp.eq.s32.totalorder %s311, 0
      %s314 = sadd.s32 %s313, 1
      %s315 = scalar_select %p312, %s313, %s314
      %p318 = pneg %p312
      %p319 = scmp.eq.s32.totalorder %s46, 7
      %p320 = por %p318, %p319
      %p321 = scmp.ne.s32.totalorder %s313, %s316
      %p322 = scmp.eq.s32.totalorder %s46, 0
      %p323 = por %p321, %p322
      %p324 = scmp.ne.s32.totalorder %s313, %s316
      %p325 = scmp.eq.s32.totalorder %s51, 7
      %p326 = por %p324, %p325
      %p327 = scmp.ne.s32.totalorder %s316, %s317
      %p328 = scmp.eq.s32.totalorder %s51, 0
      %p329 = por %p327, %p328
      %p330 = scmp.ne.s32.totalorder %s316, %s317
      %p331 = scmp.eq.s32.totalorder %s52, 7
      %p332 = por %p330, %p331
      %p334 = scmp.ne.s32.totalorder %s317, %s333
      %p335 = scmp.eq.s32.totalorder %s52, 0
      %p336 = por %p334, %p335
      %s337 = ssub.s32 %s55, %s64
      %p338 = scmp.eq.s32.totalorder %s337, 0
      %s340 = sadd.s32 %s339, 1
      %s341 = scalar_select %p338, %s339, %s340
      %p344 = pneg %p338
      %p345 = scmp.eq.s32.totalorder %s46, 7
      %p346 = por %p344, %p345
      %p347 = scmp.ne.s32.totalorder %s339, %s342
      %p348 = scmp.eq.s32.totalorder %s46, 0
      %p349 = por %p347, %p348
      %p350 = scmp.ne.s32.totalorder %s339, %s342
      %p351 = scmp.eq.s32.totalorder %s51, 7
      %p352 = por %p350, %p351
      %p353 = scmp.ne.s32.totalorder %s342, %s343
      %p354 = scmp.eq.s32.totalorder %s51, 0
      %p355 = por %p353, %p354
      %p356 = scmp.ne.s32.totalorder %s342, %s343
      %p357 = scmp.eq.s32.totalorder %s52, 7
      %p358 = por %p356, %p357
      %p360 = scmp.ne.s32.totalorder %s343, %s359
      %p361 = scmp.eq.s32.totalorder %s52, 0
      %p362 = por %p360, %p361
      %s364 = sadd.s32 %s363, 1
      %p367 = scmp.eq.s32.totalorder %s46, 7
      %p368 = scmp.ne.s32.totalorder %s363, %s365
      %p369 = scmp.eq.s32.totalorder %s46, 0
      %p370 = por %p368, %p369
      %p371 = scmp.ne.s32.totalorder %s363, %s365
      %p372 = scmp.eq.s32.totalorder %s51, 7
      %p373 = por %p371, %p372
      %p374 = scmp.ne.s32.totalorder %s365, %s366
      %p375 = scmp.eq.s32.totalorder %s51, 0
      %p376 = por %p374, %p375
      %p377 = scmp.ne.s32.totalorder %s365, %s366
      %p378 = scmp.eq.s32.totalorder %s52, 7
      %p379 = por %p377, %p378
      %p381 = scmp.ne.s32.totalorder %s366, %s380
      %p382 = scmp.eq.s32.totalorder %s52, 0
      %p383 = por %p381, %p382
      %s385 = sadd.s32 %s384, 1
      %p388 = scmp.eq.s32.totalorder %s46, 7
      %p389 = scmp.ne.s32.totalorder %s384, %s386
      %p390 = scmp.eq.s32.totalorder %s46, 0
      %p391 = por %p389, %p390
      %p392 = scmp.ne.s32.totalorder %s384, %s386
      %p393 = scmp.eq.s32.totalorder %s51, 7
      %p394 = por %p392, %p393
      %p395 = scmp.ne.s32.totalorder %s386, %s387
      %p396 = scmp.eq.s32.totalorder %s51, 0
      %p397 = por %p395, %p396
      %p398 = scmp.ne.s32.totalorder %s386, %s387
      %p399 = scmp.eq.s32.totalorder %s52, 7
      %p400 = por %p398, %p399
      %p402 = scmp.ne.s32.totalorder %s387, %s401
      %p403 = scmp.eq.s32.totalorder %s52, 0
      %p404 = por %p402, %p403
      %s406 = sadd.s32 %s405, 1
      %p409 = scmp.eq.s32.totalorder %s46, 7
      %p410 = scmp.ne.s32.totalorder %s405, %s407
      %p411 = scmp.eq.s32.totalorder %s46, 0
      %p412 = por %p410, %p411
      %p413 = scmp.ne.s32.totalorder %s405, %s407
      %p414 = scmp.eq.s32.totalorder %s51, 7
      %p415 = por %p413, %p414
      %p416 = scmp.ne.s32.totalorder %s407, %s408
      %p417 = scmp.eq.s32.totalorder %s51, 0
      %p418 = por %p416, %p417
      %p419 = scmp.ne.s32.totalorder %s407, %s408
      %p420 = scmp.eq.s32.totalorder %s52, 7
      %p421 = por %p419, %p420
      %p423 = scmp.ne.s32.totalorder %s408, %s422
      %p424 = scmp.eq.s32.totalorder %s52, 0
      %p425 = por %p423, %p424
      %s427 = sadd.s32 %s426, 1
      %p430 = scmp.eq.s32.totalorder %s46, 7
      %p431 = scmp.ne.s32.totalorder %s426, %s428
      %p432 = scmp.eq.s32.totalorder %s46, 0
      %p433 = por %p431, %p432
      %p434 = scmp.ne.s32.totalorder %s426, %s428
      %p435 = scmp.eq.s32.totalorder %s51, 7
      %p436 = por %p434, %p435
      %p437 = scmp.ne.s32.totalorder %s428, %s429
      %p438 = scmp.eq.s32.totalorder %s51, 0
      %p439 = por %p437, %p438
      %p440 = scmp.ne.s32.totalorder %s428, %s429
      %p441 = scmp.eq.s32.totalorder %s52, 7
      %p442 = por %p440, %p441
      %p444 = scmp.ne.s32.totalorder %s429, %s443
      %p445 = scmp.eq.s32.totalorder %s52, 0
      %p446 = por %p444, %p445
      %s448 = sadd.s32 %s447, 1
      %p451 = scmp.eq.s32.totalorder %s46, 7
      %p452 = scmp.ne.s32.totalorder %s447, %s449
      %p453 = scmp.eq.s32.totalorder %s46, 0
      %p454 = por %p452, %p453
      %p455 = scmp.ne.s32.totalorder %s447, %s449
      %p456 = scmp.eq.s32.totalorder %s51, 7
      %p457 = por %p455, %p456
      %p458 = scmp.ne.s32.totalorder %s449, %s450
      %p459 = scmp.eq.s32.totalorder %s51, 0
      %p460 = por %p458, %p459
      %p461 = scmp.ne.s32.totalorder %s449, %s450
      %p462 = scmp.eq.s32.totalorder %s52, 7
      %p463 = por %p461, %p462
      %p465 = scmp.ne.s32.totalorder %s450, %s464
      %p466 = scmp.eq.s32.totalorder %s52, 0
      %p467 = por %p465, %p466
      %s469 = sadd.s32 %s468, 1
      %p472 = scmp.eq.s32.totalorder %s46, 7
      %p473 = scmp.ne.s32.totalorder %s468, %s470
      %p474 = scmp.eq.s32.totalorder %s46, 0
      %p475 = por %p473, %p474
      %p476 = scmp.ne.s32.totalorder %s468, %s470
      %p477 = scmp.eq.s32.totalorder %s51, 7
      %p478 = por %p476, %p477
      %p479 = scmp.ne.s32.totalorder %s470, %s471
      %p480 = scmp.eq.s32.totalorder %s51, 0
      %p481 = por %p479, %p480
      %p482 = scmp.ne.s32.totalorder %s470, %s471
      %p483 = scmp.eq.s32.totalorder %s52, 7
      %p484 = por %p482, %p483
      %p486 = scmp.ne.s32.totalorder %s471, %s485
      %p487 = scmp.eq.s32.totalorder %s52, 0
      %p488 = por %p486, %p487
      %s490 = sadd.s32 %s489, 1
      %p493 = scmp.eq.s32.totalorder %s46, 7
      %p494 = scmp.ne.s32.totalorder %s489, %s491
      %p495 = scmp.eq.s32.totalorder %s46, 0
      %p496 = por %p494, %p495
      %p497 = scmp.ne.s32.totalorder %s489, %s491
      %p498 = scmp.eq.s32.totalorder %s51, 7
      %p499 = por %p497, %p498
      %p500 = scmp.ne.s32.totalorder %s491, %s492
      %p501 = scmp.eq.s32.totalorder %s51, 0
      %p502 = por %p500, %p501
      %p503 = scmp.ne.s32.totalorder %s491, %s492
      %p504 = scmp.eq.s32.totalorder %s52, 7
      %p505 = por %p503, %p504
      %p507 = scmp.ne.s32.totalorder %s492, %s506
      %p508 = scmp.eq.s32.totalorder %s52, 0
      %p509 = por %p507, %p508
      %s511 = sadd.s32 %s510, 1
      %p514 = scmp.eq.s32.totalorder %s46, 7
      %p515 = scmp.ne.s32.totalorder %s510, %s512
      %p516 = scmp.eq.s32.totalorder %s46, 0
      %p517 = por %p515, %p516
      %p518 = scmp.ne.s32.totalorder %s510, %s512
      %p519 = scmp.eq.s32.totalorder %s51, 7
      %p520 = por %p518, %p519
      %p521 = scmp.ne.s32.totalorder %s512, %s513
      %p522 = scmp.eq.s32.totalorder %s51, 0
      %p523 = por %p521, %p522
      %p524 = scmp.ne.s32.totalorder %s512, %s513
      %p525 = scmp.eq.s32.totalorder %s52, 7
      %p526 = por %p524, %p525
      %p528 = scmp.ne.s32.totalorder %s513, %s527
      %p529 = scmp.eq.s32.totalorder %s52, 0
      %p530 = por %p528, %p529
      %s531 = ssub.s32 %s53, %s72
      %s532 = ssub.s32 %s54, %s68
      %s533 = sor.u32 %s531, %s532
      %p534 = scmp.eq.s32.totalorder %s533, 0
      %s536 = sadd.s32 %s535, 1
      %s537 = scalar_select %p534, %s535, %s536
      %p540 = pneg %p534
      %p541 = scmp.eq.s32.totalorder %s46, 7
      %p542 = por %p540, %p541
      %p543 = scmp.ne.s32.totalorder %s535, %s538
      %p544 = scmp.eq.s32.totalorder %s46, 0
      %p545 = por %p543, %p544
      %p546 = scmp.ne.s32.totalorder %s535, %s538
      %p547 = scmp.eq.s32.totalorder %s51, 7
      %p548 = por %p546, %p547
      %p549 = scmp.ne.s32.totalorder %s538, %s539
      %p550 = scmp.eq.s32.totalorder %s51, 0
      %p551 = por %p549, %p550
      %p552 = scmp.ne.s32.totalorder %s538, %s539
      %p553 = scmp.eq.s32.totalorder %s52, 7
      %p554 = por %p552, %p553
      %p556 = scmp.ne.s32.totalorder %s539, %s555
      %p557 = scmp.eq.s32.totalorder %s52, 0
      %p558 = por %p556, %p557
      %p559 = scmp.le.s32.totalorder 1, %s46
      %p560 = scmp.lt.s32.totalorder %s46, 9
      %p561 = pnand %p559, %p560
      %p562 = pneg %p561
      // Predicated region
      $region9: #{tpu_custom_call.1} parent=5 // pred_check
        _
      $region10: #{tpu_custom_call.1} parent=5 // pred_check_branch
        %564 = sbr.rel (%p561) target = $region12
      $region11: #{tpu_custom_call.1} parent=5 // pred_region
        %s565 = ssub.s32 %s46, 1
        // Predicated region
        $region13: #{tpu_custom_call.1} parent=11 // pred_check
          %p566 = pneg %p376
        $region14: #{tpu_custom_call.1} parent=11 // pred_check_branch
          %568 = sbr.rel (%p566) target = $region16
        $region15: #{tpu_custom_call.1} parent=11 // pred_region
          %s570 = ssub.s32 256, 256
          %571 = vsyncadd [#allocation25], %s570
          %s572 = sshll.u32 [#allocation24], 4
          %s573 = int_to_ptr.vmem [resolvable:$true] %s572
          %578 = dma.hbm_to_vmem [thread:$0]  %s11, 256, %s573, [#allocation25], 64, 64, 4
        $region16: #{tpu_custom_call.1} parent=11 // pred_fallthru
          _
        // Predicated region
        $region17: #{tpu_custom_call.1} parent=11 // pred_check
          %p579 = pneg %p397
        $region18: #{tpu_custom_call.1} parent=11 // pred_check_branch
          %581 = sbr.rel (%p579) target = $region20
        $region19: #{tpu_custom_call.1} parent=11 // pred_region
          %s583 = ssub.s32 16, 16
          %584 = vsyncadd [#allocation25], %s583
          %s586 = sshll.u32 [#allocation26], 4
          %s587 = int_to_ptr.vmem [resolvable:$true] %s586
          %589 = dma.hbm_to_vmem [thread:$0]  %s12, 16, %s587, [#allocation25]
        $region20: #{tpu_custom_call.1} parent=11 // pred_fallthru
          _
        // Predicated region
        $region21: #{tpu_custom_call.1} parent=11 // pred_check
          %p590 = pneg %p418
        $region22: #{tpu_custom_call.1} parent=11 // pred_check_branch
          %592 = sbr.rel (%p590) target = $region24
        $region23: #{tpu_custom_call.1} parent=11 // pred_region
          _
        $region24: #{tpu_custom_call.1} parent=11 // pred_fallthru
          _
        // Predicated region
        $region25: #{tpu_custom_call.1} parent=11 // pred_check
          %p593 = pneg %p439
        $region26: #{tpu_custom_call.1} parent=11 // pred_check_branch
          %595 = sbr.rel (%p593) target = $region28
        $region27: #{tpu_custom_call.1} parent=11 // pred_region
          %s597 = ssub.s32 16, 16
          %598 = vsyncadd [#allocation28], %s597
          %s600 = sshll.u32 [#allocation27], 4
          %s601 = int_to_ptr.vmem [resolvable:$true] %s600
          %603 = dma.hbm_to_vmem [thread:$0]  %s14, 16, %s601, [#allocation28]
        $region28: #{tpu_custom_call.1} parent=11 // pred_fallthru
          _
        // Predicated region
        $region29: #{tpu_custom_call.1} parent=11 // pred_check
          %p604 = pneg %p460
        $region30: #{tpu_custom_call.1} parent=11 // pred_check_branch
          %606 = sbr.rel (%p604) target = $region32
        $region31: #{tpu_custom_call.1} parent=11 // pred_region
          %s608 = ssub.s32 16, 16
          %609 = vsyncadd [#allocation28], %s608
          %s611 = sshll.u32 [#allocation29], 4
          %s612 = int_to_ptr.vmem [resolvable:$true] %s611
          %614 = dma.hbm_to_vmem [thread:$0]  %s15, 16, %s612, [#allocation28]
        $region32: #{tpu_custom_call.1} parent=11 // pred_fallthru
          _
        // Predicated region
        $region33: #{tpu_custom_call.1} parent=11 // pred_check
          %p615 = pneg %p481
        $region34: #{tpu_custom_call.1} parent=11 // pred_check_branch
          %617 = sbr.rel (%p615) target = $region36
        $region35: #{tpu_custom_call.1} parent=11 // pred_region
          %s619 = ssub.s32 16, 16
          %620 = vsyncadd [#allocation31], %s619
          %s622 = sshll.u32 [#allocation30], 4
          %s623 = int_to_ptr.vmem [resolvable:$true] %s622
          %625 = dma.hbm_to_vmem [thread:$0]  %s16, 16, %s623, [#allocation31]
        $region36: #{tpu_custom_call.1} parent=11 // pred_fallthru
          _
        // Predicated region
        $region37: #{tpu_custom_call.1} parent=11 // pred_check
          %p626 = pneg %p502
        $region38: #{tpu_custom_call.1} parent=11 // pred_check_branch
          %628 = sbr.rel (%p626) target = $region40
        $region39: #{tpu_custom_call.1} parent=11 // pred_region
          _
        $region40: #{tpu_custom_call.1} parent=11 // pred_fallthru
          _
        // Predicated region
        $region41: #{tpu_custom_call.1} parent=11 // pred_check
          %p629 = pneg %p523
        $region42: #{tpu_custom_call.1} parent=11 // pred_check_branch
          %631 = sbr.rel (%p629) target = $region44
        $region43: #{tpu_custom_call.1} parent=11 // pred_region
          _
        $region44: #{tpu_custom_call.1} parent=11 // pred_fallthru
          _
      $region12: #{tpu_custom_call.1} parent=5 // pred_fallthru
        _
      %p632 = scmp.lt.s32.totalorder %s46, 8
      // Predicated region
      $region45: #{tpu_custom_call.1} parent=5 // pred_check
        %p633 = pneg %p632
      $region46: #{tpu_custom_call.1} parent=5 // pred_check_branch
        %635 = sbr.rel (%p633) target = $region48
      $region47: #{tpu_custom_call.1} parent=5 // pred_region
        // Predicated region
        $region49: #{tpu_custom_call.1} parent=47 // pred_check
          %p636 = pneg %p87
        $region50: #{tpu_custom_call.1} parent=47 // pred_check_branch
          %638 = sbr.rel (%p636) target = $region52
        $region51: #{tpu_custom_call.1} parent=47 // pred_region
          %s639 = sand.u32 %s77, 1
          %s640 = scalar_lea.sflag [#allocation10], %s639
          %s641 = sand.u32 %s77, 1
          %s642 = smul.addr %s641, 8
          %s643 = scalar_lea.vmem [#allocation9], %s642
          %s645 = ssub.s32 128, 128
          %646 = vsyncadd %s640, %s645
          %s647 = smul.addr %s53, 2
          %s648 = sadd.s32 %s54, %s647
          %s649 = smul.addr %s648, 128
          %s650 = scalar_lea.hbm %s0, %s649
          %s652 = sshll.u32 %s643, 4
          %s653 = int_to_ptr.vmem [resolvable:$true] %s652
          %655 = dma.hbm_to_vmem [thread:$0]  %s650, 128, %s653, %s640
        $region52: #{tpu_custom_call.1} parent=47 // pred_fallthru
          _
        // Predicated region
        $region53: #{tpu_custom_call.1} parent=47 // pred_check
          %p656 = pneg %p115
        $region54: #{tpu_custom_call.1} parent=47 // pred_check_branch
          %658 = sbr.rel (%p656) target = $region56
        $region55: #{tpu_custom_call.1} parent=47 // pred_region
          %s659 = sand.u32 %s46, 1
          %s660 = scalar_lea.sflag [#allocation13], %s659
          %s661 = sand.u32 %s105, 1
          %s662 = smul.addr %s661, 8
          %s663 = scalar_lea.vmem [#allocation12], %s662
          %s665 = ssub.s32 128, 128
          %666 = vsyncadd %s660, %s665
          %s667 = smul.addr %s53, 2
          %s668 = sadd.s32 %s55, %s667
          %s669 = smul.addr %s668, 128
          %s670 = scalar_lea.hbm %s1, %s669
          %s672 = sshll.u32 %s663, 4
          %s673 = int_to_ptr.vmem [resolvable:$true] %s672
          %675 = dma.hbm_to_vmem [thread:$0]  %s670, 128, %s673, %s660
        $region56: #{tpu_custom_call.1} parent=47 // pred_fallthru
          _
        // Predicated region
        $region57: #{tpu_custom_call.1} parent=47 // pred_check
          %p676 = pneg %p141
        $region58: #{tpu_custom_call.1} parent=47 // pred_check_branch
          %678 = sbr.rel (%p676) target = $region60
        $region59: #{tpu_custom_call.1} parent=47 // pred_region
          %s679 = sand.u32 %s46, 1
          %s680 = scalar_lea.sflag [#allocation13], %s679
          %s681 = sand.u32 %s131, 1
          %s682 = scalar_lea.vmem [#allocation14], %s681
          %s684 = ssub.s32 16, 16
          %685 = vsyncadd %s680, %s684
          %s686 = smul.addr %s53, 16
          %s687 = scalar_lea.hbm %s2, %s686
          %s689 = sshll.u32 %s682, 4
          %s690 = int_to_ptr.vmem [resolvable:$true] %s689
          %692 = dma.hbm_to_vmem [thread:$0]  %s687, 16, %s690, %s680
        $region60: #{tpu_custom_call.1} parent=47 // pred_fallthru
          _
        // Predicated region
        $region61: #{tpu_custom_call.1} parent=47 // pred_check
          %p693 = pneg %p167
        $region62: #{tpu_custom_call.1} parent=47 // pred_check_branch
          %695 = sbr.rel (%p693) target = $region64
        $region63: #{tpu_custom_call.1} parent=47 // pred_region
          %s696 = sand.u32 %s46, 1
          %s697 = scalar_lea.sflag [#allocation16], %s696
          %s698 = sand.u32 %s157, 1
          %s699 = scalar_lea.vmem [#allocation15], %s698
          %s701 = ssub.s32 16, 16
          %702 = vsyncadd %s697, %s701
          %s703 = smul.addr %s53, 16
          %s704 = scalar_lea.hbm %s3, %s703
          %s706 = sshll.u32 %s699, 4
          %s707 = int_to_ptr.vmem [resolvable:$true] %s706
          %709 = dma.hbm_to_vmem [thread:$0]  %s704, 16, %s707, %s697
        $region64: #{tpu_custom_call.1} parent=47 // pred_fallthru
          _
        // Predicated region
        $region65: #{tpu_custom_call.1} parent=47 // pred_check
          %p710 = pneg %p193
        $region66: #{tpu_custom_call.1} parent=47 // pred_check_branch
          %712 = sbr.rel (%p710) target = $region68
        $region67: #{tpu_custom_call.1} parent=47 // pred_region
          %s713 = sand.u32 %s46, 1
          %s714 = scalar_lea.sflag [#allocation16], %s713
          %s715 = sand.u32 %s183, 1
          %s716 = scalar_lea.vmem [#allocation17], %s715
          %s718 = ssub.s32 16, 16
          %719 = vsyncadd %s714, %s718
          %s720 = smul.addr %s53, 16
          %s721 = scalar_lea.hbm %s4, %s720
          %s723 = sshll.u32 %s716, 4
          %s724 = int_to_ptr.vmem [resolvable:$true] %s723
          %726 = dma.hbm_to_vmem [thread:$0]  %s721, 16, %s724, %s714
        $region68: #{tpu_custom_call.1} parent=47 // pred_fallthru
          _
        // Predicated region
        $region69: #{tpu_custom_call.1} parent=47 // pred_check
          %p727 = pneg %p219
        $region70: #{tpu_custom_call.1} parent=47 // pred_check_branch
          %729 = sbr.rel (%p727) target = $region72
        $region71: #{tpu_custom_call.1} parent=47 // pred_region
          %p730 = scmp.lt.s32.totalorder %s54, 1
          %s731 = scalar_select %p730, %s54, 1
          %s732 = smul.addr %s731, 8
          %s733 = scalar_lea.vmem %s5, %s732
        $region72: #{tpu_custom_call.1} parent=47 // pred_fallthru
          _
        // Predicated region
        $region73: #{tpu_custom_call.1} parent=47 // pred_check
          %p734 = pneg %p245
        $region74: #{tpu_custom_call.1} parent=47 // pred_check_branch
          %736 = sbr.rel (%p734) target = $region76
        $region75: #{tpu_custom_call.1} parent=47 // pred_region
          %s737 = sand.u32 %s46, 1
          %s738 = scalar_lea.sflag [#allocation19], %s737
          %s739 = sand.u32 %s235, 1
          %s740 = smul.addr %s739, 8
          %s741 = scalar_lea.vmem [#allocation18], %s740
          %s743 = ssub.s32 128, 128
          %744 = vsyncadd %s738, %s743
          %s745 = smul.addr %s54, 128
          %s746 = scalar_lea.hbm %s6, %s745
          %s748 = sshll.u32 %s741, 4
          %s749 = int_to_ptr.vmem [resolvable:$true] %s748
          %751 = dma.hbm_to_vmem [thread:$0]  %s746, 128, %s749, %s738
        $region76: #{tpu_custom_call.1} parent=47 // pred_fallthru
          _
        // Predicated region
        $region77: #{tpu_custom_call.1} parent=47 // pred_check
          %p752 = pneg %p271
        $region78: #{tpu_custom_call.1} parent=47 // pred_check_branch
          %754 = sbr.rel (%p752) target = $region80
        $region79: #{tpu_custom_call.1} parent=47 // pred_region
          %s755 = sand.u32 %s46, 1
          %s756 = scalar_lea.sflag [#allocation19], %s755
          %s757 = sand.u32 %s261, 1
          %s758 = smul.addr %s757, 8
          %s759 = scalar_lea.vmem [#allocation20], %s758
          %s761 = ssub.s32 128, 128
          %762 = vsyncadd %s756, %s761
          %s763 = smul.addr %s54, 128
          %s764 = scalar_lea.hbm %s7, %s763
          %s766 = sshll.u32 %s759, 4
          %s767 = int_to_ptr.vmem [resolvable:$true] %s766
          %769 = dma.hbm_to_vmem [thread:$0]  %s764, 128, %s767, %s756
        $region80: #{tpu_custom_call.1} parent=47 // pred_fallthru
          _
        // Predicated region
        $region81: #{tpu_custom_call.1} parent=47 // pred_check
          %p770 = pneg %p297
        $region82: #{tpu_custom_call.1} parent=47 // pred_check_branch
          %772 = sbr.rel (%p770) target = $region84
        $region83: #{tpu_custom_call.1} parent=47 // pred_region
          %s773 = sand.u32 %s46, 1
          %s774 = scalar_lea.sflag [#allocation22], %s773
          %s775 = sand.u32 %s287, 1
          %s776 = smul.addr %s775, 8
          %s777 = scalar_lea.vmem [#allocation21], %s776
          %s779 = ssub.s32 128, 128
          %780 = vsyncadd %s774, %s779
          %s781 = smul.addr %s55, 128
          %s782 = scalar_lea.hbm %s8, %s781
          %s784 = sshll.u32 %s777, 4
          %s785 = int_to_ptr.vmem [resolvable:$true] %s784
          %787 = dma.hbm_to_vmem [thread:$0]  %s782, 128, %s785, %s774
        $region84: #{tpu_custom_call.1} parent=47 // pred_fallthru
          _
        // Predicated region
        $region85: #{tpu_custom_call.1} parent=47 // pred_check
          %p788 = pneg %p323
        $region86: #{tpu_custom_call.1} parent=47 // pred_check_branch
          %790 = sbr.rel (%p788) target = $region88
        $region87: #{tpu_custom_call.1} parent=47 // pred_region
          %p791 = scmp.lt.s32.totalorder %s55, 1
          %s792 = scalar_select %p791, %s55, 1
          %s793 = smul.addr %s792, 8
          %s794 = scalar_lea.vmem %s9, %s793
        $region88: #{tpu_custom_call.1} parent=47 // pred_fallthru
          _
        // Predicated region
        $region89: #{tpu_custom_call.1} parent=47 // pred_check
          %p795 = pneg %p349
        $region90: #{tpu_custom_call.1} parent=47 // pred_check_branch
          %797 = sbr.rel (%p795) target = $region92
        $region91: #{tpu_custom_call.1} parent=47 // pred_region
          %s798 = sand.u32 %s46, 1
          %s799 = scalar_lea.sflag [#allocation22], %s798
          %s800 = sand.u32 %s339, 1
          %s801 = smul.addr %s800, 8
          %s802 = scalar_lea.vmem [#allocation23], %s801
          %s804 = ssub.s32 128, 128
          %805 = vsyncadd %s799, %s804
          %s806 = smul.addr %s55, 128
          %s807 = scalar_lea.hbm %s10, %s806
          %s809 = sshll.u32 %s802, 4
          %s810 = int_to_ptr.vmem [resolvable:$true] %s809
          %812 = dma.hbm_to_vmem [thread:$0]  %s807, 128, %s810, %s799
        $region92: #{tpu_custom_call.1} parent=47 // pred_fallthru
          _
      $region48: #{tpu_custom_call.1} parent=5 // pred_fallthru
        _
      %p813 = scmp.le.s32.totalorder 1, %s46
      %p814 = scmp.lt.s32.totalorder %s46, 9
      %p815 = pnand %p813, %p814
      %p816 = pneg %p815
      // Predicated region
      $region93: #{tpu_custom_call.1} parent=5 // pred_check
        _
      $region94: #{tpu_custom_call.1} parent=5 // pred_check_branch
        %818 = sbr.rel (%p815) target = $region96
      $region95: #{tpu_custom_call.1} parent=5 // pred_region
        %s819 = ssub.s32 %s46, 1
        %s820 = sand.u32 %s80, 1
        %s821 = scalar_lea.sflag [#allocation10], %s820
        %s822 = sand.u32 %s80, 1
        %s823 = smul.addr %s822, 8
        %s824 = scalar_lea.vmem [#allocation9], %s823
        // Predicated region
        $region97: #{tpu_custom_call.1} parent=95 // pred_check
          %p825 = pneg %p93
        $region98: #{tpu_custom_call.1} parent=95 // pred_check_branch
          %827 = sbr.rel (%p825) target = $region100
        $region99: #{tpu_custom_call.1} parent=95 // pred_region
          %828 = dma.done %s821, 128
        $region100: #{tpu_custom_call.1} parent=95 // pred_fallthru
          _
        %s829 = sand.u32 %s51, 1
        %s830 = scalar_lea.sflag [#allocation13], %s829
        %s831 = sand.u32 %s108, 1
        %s832 = smul.addr %s831, 8
        %s833 = scalar_lea.vmem [#allocation12], %s832
        // Predicated region
        $region101: #{tpu_custom_call.1} parent=95 // pred_check
          %p834 = pneg %p121
        $region102: #{tpu_custom_call.1} parent=95 // pred_check_branch
          %836 = sbr.rel (%p834) target = $region104
        $region103: #{tpu_custom_call.1} parent=95 // pred_region
          %837 = dma.done %s830, 128
        $region104: #{tpu_custom_call.1} parent=95 // pred_fallthru
          _
        %s838 = sand.u32 %s51, 1
        %s839 = scalar_lea.sflag [#allocation13], %s838
        %s840 = sand.u32 %s134, 1
        %s841 = scalar_lea.vmem [#allocation14], %s840
        // Predicated region
        $region105: #{tpu_custom_call.1} parent=95 // pred_check
          %p842 = pneg %p147
        $region106: #{tpu_custom_call.1} parent=95 // pred_check_branch
          %844 = sbr.rel (%p842) target = $region108
        $region107: #{tpu_custom_call.1} parent=95 // pred_region
          %845 = dma.done %s839, 16
        $region108: #{tpu_custom_call.1} parent=95 // pred_fallthru
          _
        %s846 = sand.u32 %s51, 1
        %s847 = scalar_lea.sflag [#allocation16], %s846
        %s848 = sand.u32 %s160, 1
        %s849 = scalar_lea.vmem [#allocation15], %s848
        // Predicated region
        $region109: #{tpu_custom_call.1} parent=95 // pred_check
          %p850 = pneg %p173
        $region110: #{tpu_custom_call.1} parent=95 // pred_check_branch
          %852 = sbr.rel (%p850) target = $region112
        $region111: #{tpu_custom_call.1} parent=95 // pred_region
          %853 = dma.done %s847, 16
        $region112: #{tpu_custom_call.1} parent=95 // pred_fallthru
          _
        %s854 = sand.u32 %s51, 1
        %s855 = scalar_lea.sflag [#allocation16], %s854
        %s856 = sand.u32 %s186, 1
        %s857 = scalar_lea.vmem [#allocation17], %s856
        // Predicated region
        $region113: #{tpu_custom_call.1} parent=95 // pred_check
          %p858 = pneg %p199
        $region114: #{tpu_custom_call.1} parent=95 // pred_check_branch
          %860 = sbr.rel (%p858) target = $region116
        $region115: #{tpu_custom_call.1} parent=95 // pred_region
          %861 = dma.done %s855, 16
        $region116: #{tpu_custom_call.1} parent=95 // pred_fallthru
          _
        %s862 = sand.u32 %s51, 1
        %s863 = scalar_lea.sflag [#allocation19], %s862
        %s864 = sand.u32 %s238, 1
        %s865 = smul.addr %s864, 8
        %s866 = scalar_lea.vmem [#allocation18], %s865
        // Predicated region
        $region117: #{tpu_custom_call.1} parent=95 // pred_check
          %p867 = pneg %p251
        $region118: #{tpu_custom_call.1} parent=95 // pred_check_branch
          %869 = sbr.rel (%p867) target = $region120
        $region119: #{tpu_custom_call.1} parent=95 // pred_region
          %870 = dma.done %s863, 128
        $region120: #{tpu_custom_call.1} parent=95 // pred_fallthru
          _
        %s871 = sand.u32 %s51, 1
        %s872 = scalar_lea.sflag [#allocation19], %s871
        %s873 = sand.u32 %s264, 1
        %s874 = smul.addr %s873, 8
        %s875 = scalar_lea.vmem [#allocation20], %s874
        // Predicated region
        $region121: #{tpu_custom_call.1} parent=95 // pred_check
          %p876 = pneg %p277
        $region122: #{tpu_custom_call.1} parent=95 // pred_check_branch
          %878 = sbr.rel (%p876) target = $region124
        $region123: #{tpu_custom_call.1} parent=95 // pred_region
          %879 = dma.done %s872, 128
        $region124: #{tpu_custom_call.1} parent=95 // pred_fallthru
          _
        %s880 = sand.u32 %s51, 1
        %s881 = scalar_lea.sflag [#allocation22], %s880
        %s882 = sand.u32 %s290, 1
        %s883 = smul.addr %s882, 8
        %s884 = scalar_lea.vmem [#allocation21], %s883
        // Predicated region
        $region125: #{tpu_custom_call.1} parent=95 // pred_check
          %p885 = pneg %p303
        $region126: #{tpu_custom_call.1} parent=95 // pred_check_branch
          %887 = sbr.rel (%p885) target = $region128
        $region127: #{tpu_custom_call.1} parent=95 // pred_region
          %888 = dma.done %s881, 128
        $region128: #{tpu_custom_call.1} parent=95 // pred_fallthru
          _
        %s889 = sand.u32 %s51, 1
        %s890 = scalar_lea.sflag [#allocation22], %s889
        %s891 = sand.u32 %s342, 1
        %s892 = smul.addr %s891, 8
        %s893 = scalar_lea.vmem [#allocation23], %s892
        // Predicated region
        $region129: #{tpu_custom_call.1} parent=95 // pred_check
          %p894 = pneg %p355
        $region130: #{tpu_custom_call.1} parent=95 // pred_check_branch
          %896 = sbr.rel (%p894) target = $region132
        $region131: #{tpu_custom_call.1} parent=95 // pred_region
          %897 = dma.done %s890, 128
        $region132: #{tpu_custom_call.1} parent=95 // pred_fallthru
          _
        // Predicated region
        $region133: #{tpu_custom_call.1} parent=95 // pred_check
          %p898 = pneg %p376
        $region134: #{tpu_custom_call.1} parent=95 // pred_check_branch
          %900 = sbr.rel (%p898) target = $region136
        $region135: #{tpu_custom_call.1} parent=95 // pred_region
          %901 = dma.done [#allocation25], 256
        $region136: #{tpu_custom_call.1} parent=95 // pred_fallthru
          _
        // Predicated region
        $region137: #{tpu_custom_call.1} parent=95 // pred_check
          %p902 = pneg %p397
        $region138: #{tpu_custom_call.1} parent=95 // pred_check_branch
          %904 = sbr.rel (%p902) target = $region140
        $region139: #{tpu_custom_call.1} parent=95 // pred_region
          %905 = dma.done [#allocation25], 16
        $region140: #{tpu_custom_call.1} parent=95 // pred_fallthru
          _
        // Predicated region
        $region141: #{tpu_custom_call.1} parent=95 // pred_check
          %p906 = pneg %p439
        $region142: #{tpu_custom_call.1} parent=95 // pred_check_branch
          %908 = sbr.rel (%p906) target = $region144
        $region143: #{tpu_custom_call.1} parent=95 // pred_region
          %909 = dma.done [#allocation28], 16
        $region144: #{tpu_custom_call.1} parent=95 // pred_fallthru
          _
        // Predicated region
        $region145: #{tpu_custom_call.1} parent=95 // pred_check
          %p910 = pneg %p460
        $region146: #{tpu_custom_call.1} parent=95 // pred_check_branch
          %912 = sbr.rel (%p910) target = $region148
        $region147: #{tpu_custom_call.1} parent=95 // pred_region
          %913 = dma.done [#allocation28], 16
        $region148: #{tpu_custom_call.1} parent=95 // pred_fallthru
          _
        // Predicated region
        $region149: #{tpu_custom_call.1} parent=95 // pred_check
          %p914 = pneg %p481
        $region150: #{tpu_custom_call.1} parent=95 // pred_check_branch
          %916 = sbr.rel (%p914) target = $region152
        $region151: #{tpu_custom_call.1} parent=95 // pred_region
          %917 = dma.done [#allocation31], 16
        $region152: #{tpu_custom_call.1} parent=95 // pred_fallthru
          _
        %s918 = sand.u32 %s80, 1
        %s919 = scalar_lea.sflag [#allocation10], %s918
        %s920 = sand.u32 %s80, 1
        %s921 = smul.addr %s920, 8
        %s922 = scalar_lea.vmem [#allocation9], %s921
        %p923 = pneg %p93
        %p924 = pneg %p90
        %s925 = sand.u32 %s51, 1
        %s926 = scalar_lea.sflag [#allocation13], %s925
        %s927 = sand.u32 %s108, 1
        %s928 = smul.addr %s927, 8
        %s929 = scalar_lea.vmem [#allocation12], %s928
        %p930 = pneg %p121
        %p931 = pneg %p118
        %s932 = sand.u32 %s51, 1
        %s933 = scalar_lea.sflag [#allocation13], %s932
        %s934 = sand.u32 %s134, 1
        %s935 = scalar_lea.vmem [#allocation14], %s934
        %p936 = pneg %p147
        %p937 = pneg %p144
        %s938 = sand.u32 %s51, 1
        %s939 = scalar_lea.sflag [#allocation16], %s938
        %s940 = sand.u32 %s160, 1
        %s941 = scalar_lea.vmem [#allocation15], %s940
        %p942 = pneg %p173
        %p943 = pneg %p170
        %s944 = sand.u32 %s51, 1
        %s945 = scalar_lea.sflag [#allocation16], %s944
        %s946 = sand.u32 %s186, 1
        %s947 = scalar_lea.vmem [#allocation17], %s946
        %p948 = pneg %p199
        %p949 = pneg %p196
        %p950 = scmp.lt.s32.totalorder %s57, 1
        %s951 = scalar_select %p950, %s57, 1
        %s952 = smul.addr %s951, 8
        %s953 = scalar_lea.vmem %s5, %s952
        %p954 = pneg %p225
        %p955 = pneg %p222
        %s956 = sand.u32 %s51, 1
        %s957 = scalar_lea.sflag [#allocation19], %s956
        %s958 = sand.u32 %s238, 1
        %s959 = smul.addr %s958, 8
        %s960 = scalar_lea.vmem [#allocation18], %s959
        %p961 = pneg %p251
        %p962 = pneg %p248
        %s963 = sand.u32 %s51, 1
        %s964 = scalar_lea.sflag [#allocation19], %s963
        %s965 = sand.u32 %s264, 1
        %s966 = smul.addr %s965, 8
        %s967 = scalar_lea.vmem [#allocation20], %s966
        %p968 = pneg %p277
        %p969 = pneg %p274
        %s970 = sand.u32 %s51, 1
        %s971 = scalar_lea.sflag [#allocation22], %s970
        %s972 = sand.u32 %s290, 1
        %s973 = smul.addr %s972, 8
        %s974 = scalar_lea.vmem [#allocation21], %s973
        %p975 = pneg %p303
        %p976 = pneg %p300
        %p977 = scmp.lt.s32.totalorder %s58, 1
        %s978 = scalar_select %p977, %s58, 1
        %s979 = smul.addr %s978, 8
        %s980 = scalar_lea.vmem %s9, %s979
        %p981 = pneg %p329
        %p982 = pneg %p326
        %s983 = sand.u32 %s51, 1
        %s984 = scalar_lea.sflag [#allocation22], %s983
        %s985 = sand.u32 %s342, 1
        %s986 = smul.addr %s985, 8
        %s987 = scalar_lea.vmem [#allocation23], %s986
        %p988 = pneg %p355
        %p989 = pneg %p352
        %p990 = pneg %p376
        %p991 = pneg %p373
        %p992 = pneg %p397
        %p993 = pneg %p394
        %p994 = pneg %p418
        %p995 = pneg %p415
        %p996 = pneg %p439
        %p997 = pneg %p436
        %p998 = pneg %p460
        %p999 = pneg %p457
        %p1000 = pneg %p481
        %p1001 = pneg %p478
        %p1002 = pneg %p502
        %p1003 = pneg %p499
        %p1004 = pneg %p523
        %p1005 = pneg %p520
        %p1006 = pneg %p551
        %p1007 = pneg %p548
        %s1008 = sand.u32 %s538, 1
        %s1009 = scalar_lea.sflag [#allocation11], %s1008
        %s1010 = sand.u32 %s538, 1
        %s1011 = smul.addr %s1010, 8
        %s1012 = scalar_lea.vmem [#allocation32], %s1011
        %p1013 = scmp.lt.s32.totalorder %s57, 1
        %s1014 = scalar_select %p1013, %s57, 1
        %s1015 = smul.addr %s1014, 8
        %s1016 = scalar_lea.vmem %s5, %s1015
        %p1017 = scmp.lt.s32.totalorder %s58, 1
        %s1018 = scalar_select %p1017, %s58, 1
        %s1019 = smul.addr %s1018, 8
        %s1020 = scalar_lea.vmem %s9, %s1019
        %v1022 = vld [vmem:[%s841] sm:$0x1]
        %v1023 = vld [vmem:[%s849] sm:$0x1]
        %p1024 = scmp.eq.s32.totalorder %s58, 0
        // Predicated region
        $region153: #{tpu_custom_call.1} parent=95 // pred_check
          %p1025 = pneg %p1024
        $region154: #{tpu_custom_call.1} parent=95 // pred_check_branch
          %1027 = sbr.rel (%p1025) target = $region156
        $region155: #{tpu_custom_call.1} parent=95 // pred_region
          %v1028 = vld [vmem:[%s824] sm:$0xff]
          %vm1029 = vcmask 261120
          %v1030 = vsel %vm1029, %v1028, 0.0
          %1031 = vadd.xlane.f32.xlu0 %v1030
          %v1032 = vpop.xlane.xlu0 %1031
          %v1033 = vrcp.pop 32.0
          %v1034 = vmul.f32 %v1032, %v1033
          %v1035 = vsub.f32 %v1028, %v1034
          %v1036 = vmul.f32 %v1035, %v1035
          %v1037 = vsel %vm1029, %v1036, 0.0
          %1038 = vadd.xlane.f32.xlu0 %v1037
          %v1039 = vpop.xlane.xlu0 %1038
          %v1040 = vmul.f32 %v1039, %v1033
          %v1041 = vadd.f32 %v1040, 1e-06
          %v1042 = vrsqrt.pop %v1041
          %v1043 = vmul.f32 %v1035, %v1042
          %v1044 = vadd.f32 %v1022, 1.0
          %v1046 = vlaneseq
          %v1047 = vshrl.u32 %v1046, 7
          %v1048 = vsub.s32 0, %v1047
          %v1049 = vrot.slane %v1044, %v1048
          %v1051 = vmul.f32 %v1043, %v1049
          %v1053 = vlaneseq
          %v1054 = vshrl.u32 %v1053, 7
          %v1055 = vsub.s32 0, %v1054
          %v1056 = vrot.slane %v1023, %v1055
          %v1058 = vadd.f32 %v1051, %v1056
          %v1059 = vpack.c.bf16 %v1058, %v1058
          %v1060 = vld [vmem:[#allocation24] sm:$0xf]
          %v1061 = vld [vmem:[#allocation24 + $0x4] sm:$0xf]
          %v1062 = vld [vmem:[#allocation24 + $0x8] sm:$0xf]
          %v1063 = vld [vmem:[#allocation24 + $0xc] sm:$0xf]
          %v1064 = vld [vmem:[#allocation26] sm:$0x1]
          %v1066 = vlaneseq
          %v1067 = vshrl.u32 %v1066, 7
          %v1068 = vsub.s32 0, %v1067
          %v1069 = vrot.slane %v1064, %v1068
          %v1075 = vunpack.c.l.b16 %v1060
          %v1076 = vunpack.c.l.b16 %v1061
          %v1077 = vunpack.c.l.b16 %v1062
          %v1078 = vunpack.c.l.b16 %v1063
          %v1079 = vpack.c.b16 %v1076, %v1075
          %v1080 = vpack.c.b16 %v1078, %v1077
          %v1084 = vsel %vm1029, %v1059, 0
          %1086 = vmatprep.subr.bf16.mxu0 0
          %1087 = vmatpush1.bf16.msra.mxu0 %v1079
          %1088 = vmatprep.subr.bf16.mxu0 0
          %1089 = vmatpush1.bf16.msra.mxu0 %v1080
          %1090 = vmatprep.subr.bf16.mxu0 0
          %1091 = vmatpush1.bf16.msra.mxu0 0
          %1092 = vmatprep.subr.bf16.mxu0 0
          %1093 = vmatpush1.bf16.msra.mxu0 0
          %1094 = vmatprep.subr.bf16.mxu0 0
          %1095 = vmatpush1.bf16.msra.mxu0 0
          %1096 = vmatprep.subr.bf16.mxu0 0
          %1097 = vmatpush1.bf16.msra.mxu0 0
          %1098 = vmatprep.subr.bf16.mxu0 0
          %1099 = vmatpush1.bf16.msra.mxu0 0
          %1100 = vmatprep.subr.bf16.mxu0 0
          %1101 = vmatpush1.bf16.msra.mxu0 0
          %1102 = vmatprep.subr.bf16.mxu0 0
          %1103 = vmatpush1.bf16.msra.mxu0 0
          %1104 = vmatprep.subr.bf16.mxu0 0
          %1105 = vmatpush1.bf16.msra.mxu0 0
          %1106 = vmatprep.subr.bf16.mxu0 0
          %1107 = vmatpush1.bf16.msra.mxu0 0
          %1108 = vmatprep.subr.bf16.mxu0 0
          %1109 = vmatpush1.bf16.msra.mxu0 0
          %1110 = vmatprep.subr.bf16.mxu0 0
          %1111 = vmatpush1.bf16.msra.mxu0 0
          %1112 = vmatprep.subr.bf16.mxu0 0
          %1113 = vmatpush1.bf16.msra.mxu0 0
          %1114 = vmatprep.subr.bf16.mxu0 0
          %1115 = vmatpush1.bf16.msra.mxu0 0
          %1116 = vmatprep.subr.bf16.mxu0 0
          %1117 = vmatpush1.bf16.msra.mxu0 0
          %1118 = vmatprep.mubr.bf16.mxu0 0
          %1119 = vmatmul.mubr.bf16.gmra.mrb[0].mxu0 %v1084
          %v1120 = vpop.f32.mrb[0].mxu0
          %v1121 = vadd.f32 %v1069, %v1120
          %v1122 = vpop.f32.mrb[0].mxu0
          %v1123 = vpop.f32.mrb[0].mxu0
          %v1124 = vpop.f32.mrb[0].mxu0
          %1125 = vdwg.mxu0
          %v1126 = vld [vmem:[#allocation29] sm:$0x1]
          %v1127 = vmul.f32 %v1121, %v1121
          %v1128 = vsel %vm1029, %v1127, 0.0
          %1129 = vadd.xlane.f32.xlu0 %v1128
          %v1130 = vpop.xlane.xlu0 %1129
          %v1131 = vmul.f32 %v1130, %v1033
          %v1132 = vadd.f32 %v1131, 1e-06
          %v1133 = vrsqrt.pop %v1132
          %v1134 = vmul.f32 %v1121, %v1133
          %v1136 = vlaneseq
          %v1137 = vshrl.u32 %v1136, 7
          %v1138 = vsub.s32 0, %v1137
          %v1139 = vrot.slane %v1126, %v1138
          %v1141 = vmul.f32 %v1134, %v1139
          %v1142 = vld [vmem:[%s1016] sm:$0xff]
          %v1143 = vld [vmem:[%s866] sm:$0xff]
          %v1144 = vld [vmem:[%s875] sm:$0xff]
          %1146 = vrot.lane.b32.xlu0 %v1141, 127
          %v1147 = vpop.permute.xlu0 %1146
          %1149 = vrot.lane.b32.xlu0 %v1141, 15
          %v1150 = vpop.permute.xlu0 %1149
          %vm1152 = vcmask 121856
          %v1153 = vsel %vm1152, %v1147, %v1150
          %1154 = vrot.lane.b32.xlu0 %v1141, 113
          %v1155 = vpop.permute.xlu0 %1154
          %1157 = vrot.lane.b32.xlu0 %v1141, 1
          %v1158 = vpop.permute.xlu0 %1157
          %vm1160 = vcmask 7168
          %v1161 = vsel %vm1160, %v1155, %v1158
          %v1162 = vmul.f32 %v1141, %v1142
          %v1163 = vmul.f32 %v1153, %v1143
          %v1164 = vadd.f32 %v1162, %v1163
          %v1165 = vmul.f32 %v1161, %v1144
          %v1166 = vadd.f32 %v1164, %v1165
          %v1167 = vpack.c.bf16 %v1166, %v1166
          %vm1168 = vcmask 125952
          %1169 = vst.msk [vmem:[#allocation2] sm:$0xf] %vm1168, %v1167
          %v1170 = vld [vmem:[%s1016] sm:$0xff]
          %v1171 = vld [vmem:[%s866] sm:$0xff]
          %v1172 = vld [vmem:[%s875] sm:$0xff]
          %1173 = vrot.lane.b32.xlu0 %v1141, 111
          %v1174 = vpop.permute.xlu0 %1173
          %v1176 = vsel %vm1152, %v1174, %v1147
          %1177 = vrot.lane.b32.xlu0 %v1141, 97
          %v1178 = vpop.permute.xlu0 %1177
          %v1180 = vsel %vm1160, %v1178, %v1155
          %1182 = vrot.lane.b32.xlu0 %v1170, 16
          %v1183 = vpop.permute.xlu0 %1182
          %v1185 = vmul.f32 %v1141, %v1183
          %v1186 = vmul.f32 %v1176, %v1171
          %1188 = vrot.lane.b32.xlu0 %v1186, 16
          %v1189 = vpop.permute.xlu0 %1188
          %v1191 = vadd.f32 %v1185, %v1189
          %v1192 = vmul.f32 %v1180, %v1172
          %1194 = vrot.lane.b32.xlu0 %v1192, 16
          %v1195 = vpop.permute.xlu0 %1194
          %v1197 = vadd.f32 %v1191, %v1195
          %v1198 = vpack.c.bf16 %v1197, %v1197
          %v1200 = vunpack.c.l.b16 %v1198
          %v1201 = vpack.c.b16 %v1200, %v1200
          %1202 = vrot.lane.b32.xlu0 %v1201, 112
          %v1203 = vpop.permute.xlu0 %1202
          %s1205 = scalar_lea.vmem [#allocation2], 4
          %1206 = vst.msk [vmem:[%s1205] sm:$0xf] %vm1168, %v1203
          %1207 = vst.msk [vmem:[#allocation5] sm:$0xff] %vm1160, -1e+30
          %1208 = vst.msk [vmem:[#allocation5 + $0x8] sm:$0xff] %vm1160, -1e+30
          %1209 = vst.msk [vmem:[#allocation6] sm:$0xff] %vm1160, 0.0
          %1210 = vst.msk [vmem:[#allocation6 + $0x8] sm:$0xff] %vm1160, 0.0
          %vm1211 = vcmask 130048
          %1212 = vst.msk [vmem:[#allocation7] sm:$0xff] %vm1211, 0.0
          %1213 = vst.msk [vmem:[#allocation7 + $0x8] sm:$0xff] %vm1211, 0.0
        $region156: #{tpu_custom_call.1} parent=95 // pred_fallthru
          _
        %v1214 = vld [vmem:[%s833] sm:$0xff]
        %vm1215 = vcmask 261120
        %v1216 = vsel %vm1215, %v1214, 0.0
        %1217 = vadd.xlane.f32.xlu0 %v1216
        %v1218 = vpop.xlane.xlu0 %1217
        %v1219 = vrcp.pop 32.0
        %v1220 = vmul.f32 %v1218, %v1219
        %v1221 = vsub.f32 %v1214, %v1220
        %v1222 = vmul.f32 %v1221, %v1221
        %v1223 = vsel %vm1215, %v1222, 0.0
        %1224 = vadd.xlane.f32.xlu0 %v1223
        %v1225 = vpop.xlane.xlu0 %1224
        %v1226 = vmul.f32 %v1225, %v1219
        %v1227 = vadd.f32 %v1226, 1e-06
        %v1228 = vrsqrt.pop %v1227
        %v1229 = vmul.f32 %v1221, %v1228
        %v1230 = vadd.f32 %v1022, 1.0
        %v1232 = vlaneseq
        %v1233 = vshrl.u32 %v1232, 7
        %v1234 = vsub.s32 0, %v1233
        %v1235 = vrot.slane %v1230, %v1234
        %v1237 = vmul.f32 %v1229, %v1235
        %v1239 = vlaneseq
        %v1240 = vshrl.u32 %v1239, 7
        %v1241 = vsub.s32 0, %v1240
        %v1242 = vrot.slane %v1023, %v1241
        %v1244 = vadd.f32 %v1237, %v1242
        %v1245 = vpack.c.bf16 %v1244, %v1244
        %v1246 = vld [vmem:[%s13] sm:$0xf]
        %v1247 = vld [vmem:[%s13 + $0x4] sm:$0xf]
        %v1248 = vld [vmem:[%s13 + $0x8] sm:$0xf]
        %v1249 = vld [vmem:[%s13 + $0xc] sm:$0xf]
        %v1250 = vld [vmem:[#allocation27] sm:$0x1]
        %v1252 = vlaneseq
        %v1253 = vshrl.u32 %v1252, 7
        %v1254 = vsub.s32 0, %v1253
        %v1255 = vrot.slane %v1250, %v1254
        %v1261 = vunpack.c.l.b16 %v1246
        %v1262 = vunpack.c.l.b16 %v1247
        %v1263 = vunpack.c.l.b16 %v1248
        %v1264 = vunpack.c.l.b16 %v1249
        %v1265 = vpack.c.b16 %v1262, %v1261
        %v1266 = vpack.c.b16 %v1264, %v1263
        %v1270 = vsel %vm1215, %v1245, 0
        %1272 = vmatprep.subr.bf16.mxu0 0
        %1273 = vmatpush1.bf16.msra.mxu0 %v1265
        %1274 = vmatprep.subr.bf16.mxu0 0
        %1275 = vmatpush1.bf16.msra.mxu0 %v1266
        %1276 = vmatprep.subr.bf16.mxu0 0
        %1277 = vmatpush1.bf16.msra.mxu0 0
        %1278 = vmatprep.subr.bf16.mxu0 0
        %1279 = vmatpush1.bf16.msra.mxu0 0
        %1280 = vmatprep.subr.bf16.mxu0 0
        %1281 = vmatpush1.bf16.msra.mxu0 0
        %1282 = vmatprep.subr.bf16.mxu0 0
        %1283 = vmatpush1.bf16.msra.mxu0 0
        %1284 = vmatprep.subr.bf16.mxu0 0
        %1285 = vmatpush1.bf16.msra.mxu0 0
        %1286 = vmatprep.subr.bf16.mxu0 0
        %1287 = vmatpush1.bf16.msra.mxu0 0
        %1288 = vmatprep.subr.bf16.mxu0 0
        %1289 = vmatpush1.bf16.msra.mxu0 0
        %1290 = vmatprep.subr.bf16.mxu0 0
        %1291 = vmatpush1.bf16.msra.mxu0 0
        %1292 = vmatprep.subr.bf16.mxu0 0
        %1293 = vmatpush1.bf16.msra.mxu0 0
        %1294 = vmatprep.subr.bf16.mxu0 0
        %1295 = vmatpush1.bf16.msra.mxu0 0
        %1296 = vmatprep.subr.bf16.mxu0 0
        %1297 = vmatpush1.bf16.msra.mxu0 0
        %1298 = vmatprep.subr.bf16.mxu0 0
        %1299 = vmatpush1.bf16.msra.mxu0 0
        %1300 = vmatprep.subr.bf16.mxu0 0
        %1301 = vmatpush1.bf16.msra.mxu0 0
        %1302 = vmatprep.subr.bf16.mxu0 0
        %1303 = vmatpush1.bf16.msra.mxu0 0
        %1304 = vmatprep.mubr.bf16.mxu0 0
        %1305 = vmatmul.mubr.bf16.gmra.mrb[0].mxu0 %v1270
        %v1306 = vpop.f32.mrb[0].mxu0
        %v1307 = vadd.f32 %v1255, %v1306
        %v1308 = vpop.f32.mrb[0].mxu0
        %v1309 = vpop.f32.mrb[0].mxu0
        %v1310 = vpop.f32.mrb[0].mxu0
        %1311 = vdwg.mxu0
        %v1312 = vld [vmem:[#allocation30] sm:$0x1]
        %v1313 = vmul.f32 %v1307, %v1307
        %v1314 = vsel %vm1215, %v1313, 0.0
        %1315 = vadd.xlane.f32.xlu0 %v1314
        %v1316 = vpop.xlane.xlu0 %1315
        %v1317 = vmul.f32 %v1316, %v1219
        %v1318 = vadd.f32 %v1317, 1e-06
        %v1319 = vrsqrt.pop %v1318
        %v1320 = vmul.f32 %v1307, %v1319
        %v1322 = vlaneseq
        %v1323 = vshrl.u32 %v1322, 7
        %v1324 = vsub.s32 0, %v1323
        %v1325 = vrot.slane %v1312, %v1324
        %v1327 = vmul.f32 %v1320, %v1325
        %v1328 = vld [vmem:[%s884] sm:$0xff]
        %v1329 = vld [vmem:[%s1020] sm:$0xff]
        %v1330 = vld [vmem:[%s893] sm:$0xff]
        %1332 = vrot.lane.b32.xlu0 %v1327, 127
        %v1333 = vpop.permute.xlu0 %1332
        %1335 = vrot.lane.b32.xlu0 %v1327, 15
        %v1336 = vpop.permute.xlu0 %1335
        %vm1338 = vcmask 121856
        %v1339 = vsel %vm1338, %v1333, %v1336
        %1340 = vrot.lane.b32.xlu0 %v1327, 113
        %v1341 = vpop.permute.xlu0 %1340
        %1343 = vrot.lane.b32.xlu0 %v1327, 1
        %v1344 = vpop.permute.xlu0 %1343
        %vm1346 = vcmask 7168
        %v1347 = vsel %vm1346, %v1341, %v1344
        %v1348 = vmul.f32 %v1327, %v1328
        %v1349 = vmul.f32 %v1339, %v1329
        %v1350 = vadd.f32 %v1348, %v1349
        %v1351 = vmul.f32 %v1347, %v1330
        %v1352 = vadd.f32 %v1350, %v1351
        %v1353 = vpack.c.bf16 %v1352, %v1352
        %vm1354 = vcmask 125952
        %1355 = vst.msk [vmem:[#allocation3] sm:$0xf] %vm1354, %v1353
        %v1356 = vpack.c.bf16 %v1307, %v1307
        %v1358 = vunpack.c.l.b16 %v1356
        %v1359 = vpack.c.b16 %v1358, %v1358
        %1360 = vrot.lane.b32.xlu0 %v1359, 96
        %v1361 = vpop.permute.xlu0 %1360
        %1363 = vst.msk [vmem:[#allocation4] sm:$0xf] %vm1354, %v1361
        %v1364 = vld [vmem:[%s884] sm:$0xff]
        %v1365 = vld [vmem:[%s1020] sm:$0xff]
        %v1366 = vld [vmem:[%s893] sm:$0xff]
        %1367 = vrot.lane.b32.xlu0 %v1327, 111
        %v1368 = vpop.permute.xlu0 %1367
        %v1370 = vsel %vm1338, %v1368, %v1333
        %1371 = vrot.lane.b32.xlu0 %v1327, 97
        %v1372 = vpop.permute.xlu0 %1371
        %v1374 = vsel %vm1346, %v1372, %v1341
        %1376 = vrot.lane.b32.xlu0 %v1364, 16
        %v1377 = vpop.permute.xlu0 %1376
        %v1379 = vmul.f32 %v1327, %v1377
        %v1380 = vmul.f32 %v1370, %v1365
        %1382 = vrot.lane.b32.xlu0 %v1380, 16
        %v1383 = vpop.permute.xlu0 %1382
        %v1385 = vadd.f32 %v1379, %v1383
        %v1386 = vmul.f32 %v1374, %v1366
        %1388 = vrot.lane.b32.xlu0 %v1386, 16
        %v1389 = vpop.permute.xlu0 %1388
        %v1391 = vadd.f32 %v1385, %v1389
        %v1392 = vpack.c.bf16 %v1391, %v1391
        %v1394 = vunpack.c.l.b16 %v1392
        %v1395 = vpack.c.b16 %v1394, %v1394
        %1396 = vrot.lane.b32.xlu0 %v1395, 112
        %v1397 = vpop.permute.xlu0 %1396
        %s1399 = scalar_lea.vmem [#allocation3], 4
        %1400 = vst.msk [vmem:[%s1399] sm:$0xf] %vm1354, %v1397
        %1401 = vrot.lane.b32.xlu0 %v1359, 80
        %v1402 = vpop.permute.xlu0 %1401
        %s1404 = scalar_lea.vmem [#allocation4], 4
        %1405 = vst.msk [vmem:[%s1404] sm:$0xf] %vm1354, %v1402
        loop: start=0, step=1, limit=2
        $region157: #{tpu_custom_call.1} parent=95 // loop_pre_header
          _
        $region158: #{tpu_custom_call.1} parent=95 // loop_header
          %s1407 = sphi 0, %s1411
          %p1408 = scmp.ge.s32.totalorder %s1407, 2
        $region159: #{tpu_custom_call.1} parent=95 // loop_header_branch
          %1410 = sbr.rel (%p1408) target = $region163
        $region160: #{tpu_custom_call.1} parent=95 // loop_body
          %s1412 = smul.addr %s1407, 4
          %s1413 = scalar_lea.vmem [#allocation2], %s1412
          %v1414 = vld [vmem:[%s1413] sm:$0xf]
          %s1415 = smul.addr %s1407, 4
          %s1416 = scalar_lea.vmem [#allocation3], %s1415
          %v1417 = vld [vmem:[%s1416] sm:$0xf]
          %vm1418 = vcmask 130048
          %v1420 = vsel %vm1418, %v1414, 0
          %v1423 = vsel %vm1418, %v1417, 0
          %1425 = vmatprep.subr.bf16.mxu0 0
          %1426 = vmatpush1.bf16.xpose.msra.mxu0 %v1423
          %1427 = vmatprep.subr.bf16.mxu0 0
          %1428 = vmatpush1.bf16.xpose.msra.mxu0 0
          %1429 = vmatprep.subr.bf16.mxu0 0
          %1430 = vmatpush1.bf16.xpose.msra.mxu0 0
          %1431 = vmatprep.subr.bf16.mxu0 0
          %1432 = vmatpush1.bf16.xpose.msra.mxu0 0
          %1433 = vmatprep.subr.bf16.mxu0 0
          %1434 = vmatpush1.bf16.xpose.msra.mxu0 0
          %1435 = vmatprep.subr.bf16.mxu0 0
          %1436 = vmatpush1.bf16.xpose.msra.mxu0 0
          %1437 = vmatprep.subr.bf16.mxu0 0
          %1438 = vmatpush1.bf16.xpose.msra.mxu0 0
          %1439 = vmatprep.subr.bf16.mxu0 0
          %1440 = vmatpush1.bf16.xpose.msra.mxu0 0
          %1441 = vmatprep.subr.bf16.mxu0 0
          %1442 = vmatpush1.bf16.xpose.msra.mxu0 0
          %1443 = vmatprep.subr.bf16.mxu0 0
          %1444 = vmatpush1.bf16.xpose.msra.mxu0 0
          %1445 = vmatprep.subr.bf16.mxu0 0
          %1446 = vmatpush1.bf16.xpose.msra.mxu0 0
          %1447 = vmatprep.subr.bf16.mxu0 0
          %1448 = vmatpush1.bf16.xpose.msra.mxu0 0
          %1449 = vmatprep.subr.bf16.mxu0 0
          %1450 = vmatpush1.bf16.xpose.msra.mxu0 0
          %1451 = vmatprep.subr.bf16.mxu0 0
          %1452 = vmatpush1.bf16.xpose.msra.mxu0 0
          %1453 = vmatprep.subr.bf16.mxu0 0
          %1454 = vmatpush1.bf16.xpose.msra.mxu0 0
          %1455 = vmatprep.subr.bf16.mxu0 0
          %1456 = vmatpush1.bf16.xpose.msra.mxu0 0
          %1457 = vmatprep.mubr.bf16.mxu0 0
          %1458 = vmatmul.mubr.bf16.gmra.mrb[0].mxu0 %v1420
          %v1459 = vpop.f32.mrb[0].mxu0
          %v1460 = vadd.f32 0.0, %v1459
          %v1461 = vpop.f32.mrb[0].mxu0
          %v1462 = vpop.f32.mrb[0].mxu0
          %v1463 = vpop.f32.mrb[0].mxu0
          %1464 = vdwg.mxu0
          %v1465 = vmul.f32 %v1460, 0.25
          %s1466 = smul.u32 %s1407, 8
          %s1467 = scalar_lea.vmem [#allocation5], %s1466
          %v1468 = vld [vmem:[%s1467] sm:$0xff]
          %vm1469 = vcmask 64512
          %v1470 = vsel %vm1469, %v1465, -inf
          %1471 = vmax.xlane.f32.xlu0 %v1470
          %v1472 = vpop.xlane.xlu0 %1471
          %v1473 = vmax.f32 %v1468, %v1472
          %v1474 = vsub.f32 %v1468, %v1473
          %v1475 = vmul.f32 %v1474, 1.442695
          %v1476 = vpow.pop %v1475
          %1478 = vset.pattern.permute.xlu0 0
          %1479 = vperm.xlu0 %1478, %v1473
          %v1480 = vpop.permute.xlu0 %1479
          %v1482 = vsub.f32 %v1465, %v1480
          %v1483 = vmul.f32 %v1482, 1.442695
          %v1484 = vpow.pop %v1483
          %s1485 = scalar_lea.vmem [#allocation6], %s1466
          %v1486 = vld [vmem:[%s1485] sm:$0xff]
          %v1487 = vmul.f32 %v1476, %v1486
          %v1488 = vsel %vm1469, %v1484, 0.0
          %1489 = vadd.xlane.f32.xlu0 %v1488
          %v1490 = vpop.xlane.xlu0 %1489
          %v1491 = vadd.f32 %v1487, %v1490
          %1492 = vst.msk [vmem:[%s1485] sm:$0xff] %vm1346, %v1491
          %s1493 = scalar_lea.vmem [#allocation7], %s1466
          %v1494 = vld [vmem:[%s1493] sm:$0xff]
          %1496 = vset.pattern.permute.xlu0 0
          %1497 = vperm.xlu0 %1496, %v1476
          %v1498 = vpop.permute.xlu0 %1497
          %v1500 = vmul.f32 %v1498, %v1494
          %v1501 = vpack.c.bf16 %v1484, %v1484
          %s1502 = smul.addr %s1407, 4
          %s1503 = scalar_lea.vmem [#allocation4], %s1502
          %v1504 = vld [vmem:[%s1503] sm:$0xf]
          %v1506 = vsel %vm1469, %v1501, 0
          %vm1508 = vcmask 1043456
          %v1510 = vsel %vm1508, %v1504, 0
          %1512 = vmatprep.subr.bf16.mxu0 0
          %1513 = vmatpush1.bf16.msra.mxu0 %v1510
          %1514 = vmatprep.subr.bf16.mxu0 0
          %1515 = vmatpush1.bf16.msra.mxu0 0
          %1516 = vmatprep.subr.bf16.mxu0 0
          %1517 = vmatpush1.bf16.msra.mxu0 0
          %1518 = vmatprep.subr.bf16.mxu0 0
          %1519 = vmatpush1.bf16.msra.mxu0 0
          %1520 = vmatprep.subr.bf16.mxu0 0
          %1521 = vmatpush1.bf16.msra.mxu0 0
          %1522 = vmatprep.subr.bf16.mxu0 0
          %1523 = vmatpush1.bf16.msra.mxu0 0
          %1524 = vmatprep.subr.bf16.mxu0 0
          %1525 = vmatpush1.bf16.msra.mxu0 0
          %1526 = vmatprep.subr.bf16.mxu0 0
          %1527 = vmatpush1.bf16.msra.mxu0 0
          %1528 = vmatprep.subr.bf16.mxu0 0
          %1529 = vmatpush1.bf16.msra.mxu0 0
          %1530 = vmatprep.subr.bf16.mxu0 0
          %1531 = vmatpush1.bf16.msra.mxu0 0
          %1532 = vmatprep.subr.bf16.mxu0 0
          %1533 = vmatpush1.bf16.msra.mxu0 0
          %1534 = vmatprep.subr.bf16.mxu0 0
          %1535 = vmatpush1.bf16.msra.mxu0 0
          %1536 = vmatprep.subr.bf16.mxu0 0
          %1537 = vmatpush1.bf16.msra.mxu0 0
          %1538 = vmatprep.subr.bf16.mxu0 0
          %1539 = vmatpush1.bf16.msra.mxu0 0
          %1540 = vmatprep.subr.bf16.mxu0 0
          %1541 = vmatpush1.bf16.msra.mxu0 0
          %1542 = vmatprep.subr.bf16.mxu0 0
          %1543 = vmatpush1.bf16.msra.mxu0 0
          %1544 = vmatprep.mubr.bf16.mxu0 0
          %1545 = vmatmul.mubr.bf16.gmra.mrb[0].mxu0 %v1506
          %v1546 = vpop.f32.mrb[0].mxu0
          %v1547 = vadd.f32 0.0, %v1546
          %v1548 = vpop.f32.mrb[0].mxu0
          %v1549 = vpop.f32.mrb[0].mxu0
          %v1550 = vpop.f32.mrb[0].mxu0
          %1551 = vdwg.mxu0
          %v1552 = vadd.f32 %v1500, %v1547
          %1553 = vst.msk [vmem:[%s1493] sm:$0xff] %vm1418, %v1552
          %1554 = vst.msk [vmem:[%s1467] sm:$0xff] %vm1346, %v1473
        $region161: #{tpu_custom_call.1} parent=95 // loop_footer
          %s1411 = sadd.s32 1, %s1407
        $region162: #{tpu_custom_call.1} parent=95 // loop_footer_branch
          %1406 = sbr.rel target = $region158
        $region163: #{tpu_custom_call.1} parent=95 // loop_exit
          _
        %p1555 = scmp.eq.s32.totalorder %s58, 1
        // Predicated region
        $region164: #{tpu_custom_call.1} parent=95 // pred_check
          %p1556 = pneg %p1555
        $region165: #{tpu_custom_call.1} parent=95 // pred_check_branch
          %1558 = sbr.rel (%p1556) target = $region167
        $region166: #{tpu_custom_call.1} parent=95 // pred_region
          %v1559 = vld [vmem:[#allocation6] sm:$0xff]
          %v1560 = vrcp.pop %v1559
          %v1561 = vld [vmem:[#allocation7] sm:$0xff]
          %1563 = vset.pattern.permute.xlu0 0
          %1564 = vperm.xlu0 %1563, %v1560
          %v1565 = vpop.permute.xlu0 %1564
          %v1567 = vmul.f32 %v1561, %v1565
          %v1568 = vpack.c.bf16 %v1567, %v1567
          %1569 = vst.msk [vmem:[#allocation8] sm:$0xf] %vm1354, %v1568
          %s1570 = scalar_lea.vmem [#allocation6], 8
          %v1571 = vld [vmem:[%s1570] sm:$0xff]
          %v1572 = vrcp.pop %v1571
          %s1573 = scalar_lea.vmem [#allocation7], 8
          %v1574 = vld [vmem:[%s1573] sm:$0xff]
          %1576 = vset.pattern.permute.xlu0 0
          %1577 = vperm.xlu0 %1576, %v1572
          %v1578 = vpop.permute.xlu0 %1577
          %v1580 = vmul.f32 %v1574, %v1578
          %v1581 = vpack.c.bf16 %v1580, %v1580
          %v1583 = vunpack.c.l.b16 %v1581
          %v1584 = vpack.c.b16 %v1583, %v1583
          %1585 = vrot.lane.b32.xlu0 %v1584, 16
          %v1586 = vpop.permute.xlu0 %1585
          %vm1588 = vcmask 257152
          %1589 = vst.msk [vmem:[#allocation8] sm:$0xf] %vm1588, %v1586
          %v1590 = vld [vmem:[#allocation8] sm:$0xf]
          %v1591 = vld [vmem:[%s17] sm:$0xf]
          %v1592 = vld [vmem:[%s17 + $0x4] sm:$0xf]
          %v1593 = vld [vmem:[%s17 + $0x8] sm:$0xf]
          %v1594 = vld [vmem:[%s17 + $0xc] sm:$0xf]
          %v1595 = vld [vmem:[%s18] sm:$0x1]
          %v1597 = vlaneseq
          %v1598 = vshrl.u32 %v1597, 7
          %v1599 = vsub.s32 0, %v1598
          %v1600 = vrot.slane %v1595, %v1599
          %v1606 = vunpack.c.l.b16 %v1591
          %v1607 = vunpack.c.l.b16 %v1592
          %v1608 = vunpack.c.l.b16 %v1593
          %v1609 = vunpack.c.l.b16 %v1594
          %v1610 = vpack.c.b16 %v1607, %v1606
          %v1611 = vpack.c.b16 %v1609, %v1608
          %v1615 = vsel %vm1215, %v1590, 0
          %1617 = vmatprep.subr.bf16.mxu0 0
          %1618 = vmatpush1.bf16.msra.mxu0 %v1610
          %1619 = vmatprep.subr.bf16.mxu0 0
          %1620 = vmatpush1.bf16.msra.mxu0 %v1611
          %1621 = vmatprep.subr.bf16.mxu0 0
          %1622 = vmatpush1.bf16.msra.mxu0 0
          %1623 = vmatprep.subr.bf16.mxu0 0
          %1624 = vmatpush1.bf16.msra.mxu0 0
          %1625 = vmatprep.subr.bf16.mxu0 0
          %1626 = vmatpush1.bf16.msra.mxu0 0
          %1627 = vmatprep.subr.bf16.mxu0 0
          %1628 = vmatpush1.bf16.msra.mxu0 0
          %1629 = vmatprep.subr.bf16.mxu0 0
          %1630 = vmatpush1.bf16.msra.mxu0 0
          %1631 = vmatprep.subr.bf16.mxu0 0
          %1632 = vmatpush1.bf16.msra.mxu0 0
          %1633 = vmatprep.subr.bf16.mxu0 0
          %1634 = vmatpush1.bf16.msra.mxu0 0
          %1635 = vmatprep.subr.bf16.mxu0 0
          %1636 = vmatpush1.bf16.msra.mxu0 0
          %1637 = vmatprep.subr.bf16.mxu0 0
          %1638 = vmatpush1.bf16.msra.mxu0 0
          %1639 = vmatprep.subr.bf16.mxu0 0
          %1640 = vmatpush1.bf16.msra.mxu0 0
          %1641 = vmatprep.subr.bf16.mxu0 0
          %1642 = vmatpush1.bf16.msra.mxu0 0
          %1643 = vmatprep.subr.bf16.mxu0 0
          %1644 = vmatpush1.bf16.msra.mxu0 0
          %1645 = vmatprep.subr.bf16.mxu0 0
          %1646 = vmatpush1.bf16.msra.mxu0 0
          %1647 = vmatprep.subr.bf16.mxu0 0
          %1648 = vmatpush1.bf16.msra.mxu0 0
          %1649 = vmatprep.mubr.bf16.mxu0 0
          %1650 = vmatmul.mubr.bf16.gmra.mrb[0].mxu0 %v1615
          %v1651 = vpop.f32.mrb[0].mxu0
          %v1652 = vadd.f32 %v1600, %v1651
          %v1653 = vpop.f32.mrb[0].mxu0
          %v1654 = vpop.f32.mrb[0].mxu0
          %v1655 = vpop.f32.mrb[0].mxu0
          %1656 = vdwg.mxu0
          %v1657 = vld [vmem:[%s824] sm:$0xff]
          %v1658 = vld [vmem:[%s857] sm:$0x1]
          %v1660 = vlaneseq
          %v1661 = vshrl.u32 %v1660, 7
          %v1662 = vsub.s32 0, %v1661
          %v1663 = vrot.slane %v1658, %v1662
          %v1665 = vmul.f32 %v1652, %v1663
          %v1666 = vadd.f32 %v1657, %v1665
          %1667 = vst.msk [vmem:[%s1012] sm:$0xff] %vm1215, %v1666
        $region167: #{tpu_custom_call.1} parent=95 // pred_fallthru
          _
        %s1668 = sand.u32 %s538, 1
        %s1669 = scalar_lea.sflag [#allocation11], %s1668
        %s1670 = sand.u32 %s538, 1
        %s1671 = smul.addr %s1670, 8
        %s1672 = scalar_lea.vmem [#allocation32], %s1671
        // Predicated region
        $region168: #{tpu_custom_call.1} parent=95 // pred_check
          %p1673 = pneg %p548
        $region169: #{tpu_custom_call.1} parent=95 // pred_check_branch
          %1675 = sbr.rel (%p1673) target = $region171
        $region170: #{tpu_custom_call.1} parent=95 // pred_region
          %s1677 = ssub.s32 128, 128
          %1678 = vsyncadd %s1669, %s1677
          %s1679 = smul.addr %s56, 2
          %s1680 = sadd.s32 %s57, %s1679
          %s1681 = smul.addr %s1680, 128
          %s1682 = scalar_lea.hbm %s19, %s1681
          %s1684 = sshll.u32 %s1672, 4
          %s1685 = int_to_ptr.vmem [resolvable:$true] %s1684
          %1687 = dma.vmem_to_hbm [thread:$0]  %s1685, 128, %s1682, %s1669
        $region171: #{tpu_custom_call.1} parent=95 // pred_fallthru
          _
      $region96: #{tpu_custom_call.1} parent=5 // pred_fallthru
        _
      %p1688 = scmp.le.s32.totalorder 2, %s46
      // Predicated region
      $region172: #{tpu_custom_call.1} parent=5 // pred_check
        %p1689 = pneg %p1688
      $region173: #{tpu_custom_call.1} parent=5 // pred_check_branch
        %1691 = sbr.rel (%p1689) target = $region175
      $region174: #{tpu_custom_call.1} parent=5 // pred_region
        %s1692 = ssub.s32 %s46, 2
        // Predicated region
        $region176: #{tpu_custom_call.1} parent=174 // pred_check
          %p1693 = pneg %p554
        $region177: #{tpu_custom_call.1} parent=174 // pred_check_branch
          %1695 = sbr.rel (%p1693) target = $region179
        $region178: #{tpu_custom_call.1} parent=174 // pred_region
          %s1696 = sand.u32 %s539, 1
          %s1697 = scalar_lea.sflag [#allocation11], %s1696
          %s1698 = sand.u32 %s539, 1
          %s1699 = smul.addr %s1698, 8
          %s1700 = scalar_lea.vmem [#allocation32], %s1699
          %1701 = dma.done %s1697, 128
        $region179: #{tpu_custom_call.1} parent=174 // pred_fallthru
          _
      $region175: #{tpu_custom_call.1} parent=5 // pred_fallthru
        _
    $region6: #{tpu_custom_call.1} parent=1 // loop_footer
      %s50 = sadd.s32 1, %s46
    $region7: #{tpu_custom_call.1} parent=1 // loop_footer_branch
      %45 = sbr.rel target = $region3
    $region8: #{tpu_custom_call.1} parent=1 // loop_exit
      _
    %1702 = vsyncpa [#allocation10], 1
    %s1703 = scalar_lea.sflag [#allocation10], 1
    %1704 = vsyncpa %s1703, 1
    %1705 = vsyncpa [#allocation13], 1
    %s1706 = scalar_lea.sflag [#allocation13], 1
    %1707 = vsyncpa %s1706, 1
    %1708 = vsyncpa [#allocation16], 1
    %s1709 = scalar_lea.sflag [#allocation16], 1
    %1710 = vsyncpa %s1709, 1
    %1711 = vsyncpa [#allocation19], 1
    %s1712 = scalar_lea.sflag [#allocation19], 1
    %1713 = vsyncpa %s1712, 1
    %1714 = vsyncpa [#allocation22], 1
    %s1715 = scalar_lea.sflag [#allocation22], 1
    %1716 = vsyncpa %s1715, 1
    %1717 = vsyncpa [#allocation25], 1
    %1718 = vsyncpa [#allocation28], 1
    %1719 = vsyncpa [#allocation31], 1
    %1720 = vsyncpa [#allocation11], 1
    %s1721 = scalar_lea.sflag [#allocation11], 1
    %1722 = vsyncpa %s1721, 1

</llo_original>
